<compile_context>
chip_gen: v7x
topology: tpu7x:2x2x1
jax: 0.10.0
libtpu: 0.0.40
codegen_flags: <defaults>
</compile_context>

<pallas_src>
import math

import jax
import jax.numpy as jnp
from jax.experimental import pallas as pl
from jax.experimental.pallas import tpu as pltpu


# ---------------------------------------------------------------------------
# Kernels
# ---------------------------------------------------------------------------
def _resblock_kernel_im2col(x_ref, w_ref, scale_ref, shift_ref, o_ref, lhs_ref):
    """C < 128 path: one MXU matmul with K = 9*C.

    x_ref:     (B, H, W, C)    f32   input tile (also the residual branch)
    w_ref:     (9*C, C)        bf16  conv weights, rows ordered (dy, dx, cin)
    scale_ref: (1, C)          f32   folded BN scale (gamma / sqrt(var+eps))
    shift_ref: (1, C)          f32   folded BN shift (beta - mean*scale)
    o_ref:     (1, B*H*W, C)   f32   output slab
    lhs_ref:   (B, H, W, 9*C)  bf16  VMEM scratch: im2col patch slab
    """
    B, H, W, C = x_ref.shape
    M = B * H * W

    x = x_ref[...]                      # single HBM->VMEM use of the tile
    xb = x.astype(jnp.bfloat16)         # one cast feeds all nine taps

    # Dense clear (unmasked bf16 stores); un-written regions of the slab are
    # exactly the zero padding of the "same" convolution.  Re-cleared every
    # step because scratch persists per-core and the halo is tap-dependent.
    lhs_ref[...] = jnp.zeros_like(lhs_ref)
    for dy in range(3):
        for dx in range(3):
            t = dy * 3 + dx
            dy0, dy1 = max(0, 1 - dy), H + min(0, 1 - dy)   # dst rows
            dx0, dx1 = max(0, 1 - dx), W + min(0, 1 - dx)   # dst cols
            sy0, sy1 = max(0, dy - 1), H + min(0, dy - 1)   # src rows
            sx0, sx1 = max(0, dx - 1), W + min(0, dx - 1)   # src cols
            lhs_ref[:, dy0:dy1, dx0:dx1, t * C:(t + 1) * C] = (
                xb[:, sy0:sy1, sx0:sx1, :])

    lhs = lhs_ref[...].reshape(M, 9 * C)          # leading-dim merge only
    acc = jnp.dot(lhs, w_ref[...], preferred_element_type=jnp.float32)

    h = acc * scale_ref[0, :] + shift_ref[0, :]   # folded BatchNorm (eval)
    y = jnp.maximum(x.reshape(M, C) + h, 0.0)     # residual + ReLU in f32
    o_ref[0] = y.astype(o_ref.dtype)


def _resblock_kernel_taps(x_ref, w_ref, scale_ref, shift_ref, o_ref, xpad_ref):
    """C >= 128 path: nine K=C matmuls from one bf16 halo slab.

    w_ref:    (3, 3, C, C)      bf16
    xpad_ref: (B, H+2, W+2, C)  bf16  VMEM scratch: zero-padded input
    """
    B, H, W, C = x_ref.shape
    M = B * H * W

    x = x_ref[...]
    xpad_ref[...] = jnp.zeros_like(xpad_ref)          # dense bf16 clear
    xpad_ref[:, 1:H + 1, 1:W + 1, :] = x.astype(xpad_ref.dtype)

    # Three partial accumulators (one per kernel row) let MXU result pops and
    # VPU adds interleave instead of one serial `acc += dot(...)` chain.
    partial = []
    for dy in range(3):
        acc = None
        for dx in range(3):
            patch = xpad_ref[:, dy:dy + H, dx:dx + W, :].reshape(M, C)
            d = jnp.dot(patch, w_ref[dy, dx],
                        preferred_element_type=jnp.float32)
            acc = d if acc is None else acc + d
        partial.append(acc)
    acc = (partial[0] + partial[1]) + partial[2]

    h = acc * scale_ref[0, :] + shift_ref[0, :]
    y = jnp.maximum(x.reshape(M, C) + h, 0.0)
    o_ref[0] = y.astype(o_ref.dtype)


# ---------------------------------------------------------------------------
# Sizing helpers
# ---------------------------------------------------------------------------
def _vmem_capacity_bytes():
    try:
        return int(pltpu.get_tpu_info().vmem_capacity_bytes)
    except Exception:
        return 64 << 20  # conservative: v7x per-core VMEM


def _per_step_vmem_bytes(B, H, W, C):
    f32, bf16 = 4, 2
    M = B * H * W
    io = 2 * M * C * f32 + 2 * M * C * f32            # in/out double buffers
    wgt = 2 * 9 * C * C * bf16                        # weight double buffer
    if C < 128:
        scratch = M * 9 * C * bf16                    # im2col patch slab
        tmp = M * 9 * C * bf16 + 3 * M * C * f32      # lhs value + acc/temps
    else:
        scratch = B * (H + 2) * (W + 2) * C * bf16    # halo slab
        tmp = 6 * M * C * f32                         # partial accs + temps
    return io + wgt + scratch + tmp


def _pick_images_per_step(N, H, W, C, budget_bytes):
    """Largest divisor B of N that fits VMEM, fills >=256 MXU rows if it can,
    and keeps >= 2 grid steps (megacore) once >=128 rows are reached."""
    best = 1
    for b in range(1, N + 1):
        if N % b:
            continue
        if _per_step_vmem_bytes(b, H, W, C) > budget_bytes:
            break
        if N > 1 and N // b < 2 and best * H * W >= 128:
            break
        best = b
        if b * H * W >= 256:
            break
    return best


# ---------------------------------------------------------------------------
# Wrappers
# ---------------------------------------------------------------------------
def residual_block_nhwc(x_nhwc, w_hwio, bn_scale, bn_shift):
    """x_nhwc: (N, H, W, C) f32; w_hwio: (3, 3, C, C). Returns (N, H, W, C)."""
    N, H, W, C = x_nhwc.shape
    cap = _vmem_capacity_bytes()
    budget = int(min(0.35 * cap, 40 << 20))
    B = _pick_images_per_step(N, H, W, C, budget)
    G = N // B
    M = B * H * W

    scale2d = bn_scale.reshape(1, C).astype(jnp.float32)
    shift2d = bn_shift.reshape(1, C).astype(jnp.float32)

    if C < 128:
        # im2col weights: rows ordered (dy, dx, cin) to match the patch slab.
        w = w_hwio.reshape(9 * C, C).astype(jnp.bfloat16)
        w_spec = pl.BlockSpec((9 * C, C), lambda g: (0, 0))
        kernel = _resblock_kernel_im2col
        scratch = [pltpu.VMEM((B, H, W, 9 * C), jnp.bfloat16)]
    else:
        w = w_hwio.astype(jnp.bfloat16)
        w_spec = pl.BlockSpec((3, 3, C, C), lambda g: (0, 0, 0, 0))
        kernel = _resblock_kernel_taps
        scratch = [pltpu.VMEM((B, H + 2, W + 2, C), jnp.bfloat16)]

    est = _per_step_vmem_bytes(B, H, W, C)
    vmem_limit = int(min(max(2 * est, 16 << 20), 0.6 * cap))

    out = pl.pallas_call(
        kernel,
        out_shape=jax.ShapeDtypeStruct((G, M, C), x_nhwc.dtype),
        grid_spec=pltpu.PrefetchScalarGridSpec(
            num_scalar_prefetch=0,
            grid=(G,),
            in_specs=[
                pl.BlockSpec((B, H, W, C), lambda g: (g, 0, 0, 0)),
                w_spec,
                pl.BlockSpec((1, C), lambda g: (0, 0)),
                pl.BlockSpec((1, C), lambda g: (0, 0)),
            ],
            out_specs=pl.BlockSpec((1, M, C), lambda g: (g, 0, 0)),
            scratch_shapes=scratch,
        ),
        compiler_params=pltpu.CompilerParams(
            dimension_semantics=("parallel",),
            vmem_limit_bytes=vmem_limit,
        ),
    )(x_nhwc, w, scale2d, shift2d)
    return out.reshape(N, H, W, C)


def residual_block_nchw(x_nchw, conv_w_oihw, gamma, beta, running_mean,
                        running_var, eps=1e-5):
    """Matches PyTorch ResidualBlock.forward with BatchNorm in eval mode."""
    # TODO(synk): BatchNorm training-mode batch statistics / running-stat
    # updates are not implemented; inference (eval) folding only.
    x_nhwc = jnp.transpose(x_nchw, (0, 2, 3, 1))            # channels -> lanes
    w_hwio = jnp.transpose(conv_w_oihw, (2, 3, 1, 0))        # (kh,kw,Cin,Cout)
    inv_std = 1.0 / jnp.sqrt(running_var + eps)
    scale = gamma * inv_std
    shift = beta - running_mean * scale
    y_nhwc = residual_block_nhwc(x_nhwc, w_hwio, scale, shift)
    return jnp.transpose(y_nhwc, (0, 3, 1, 2))


def _reference_nchw(x_nchw, conv_w_oihw, gamma, beta, running_mean,
                    running_var, eps=1e-5):
    """Pure-JAX reference (lax conv) for a sanity check."""
    h = jax.lax.conv_general_dilated(
        x_nchw, conv_w_oihw,
        window_strides=(1, 1), padding="SAME",
        dimension_numbers=("NCHW", "OIHW", "NCHW"),
    )
    inv_std = 1.0 / jnp.sqrt(running_var + eps)
    h = ((h - running_mean[None, :, None, None])
         * (gamma * inv_std)[None, :, None, None]
         + beta[None, :, None, None])
    return jnp.maximum(x_nchw + h, 0.0)


# ---------------------------------------------------------------------------
# Self-test
# ---------------------------------------------------------------------------
if __name__ == "__main__":
    def run_case(N, C, H, W, key):
        k_x, k_w, k_g, k_b, k_m, k_v = jax.random.split(key, 6)
        x = jax.random.normal(k_x, (N, C, H, W), jnp.float32)
        conv_w = jax.random.normal(k_w, (C, C, 3, 3), jnp.float32) * 0.1
        gamma = 1.0 + 0.1 * jax.random.normal(k_g, (C,), jnp.float32)
        beta = 0.1 * jax.random.normal(k_b, (C,), jnp.float32)
        mean = 0.1 * jax.random.normal(k_m, (C,), jnp.float32)
        var = 1.0 + 0.1 * jnp.abs(jax.random.normal(k_v, (C,), jnp.float32))

        y = residual_block_nchw(x, conv_w, gamma, beta, mean, var)
        y = jax.block_until_ready(y)

        y_ref = _reference_nchw(x, conv_w, gamma, beta, mean, var)
        # bf16 MXU operands with f32 accumulation -> tolerance scales ~sqrt(K).
        atol = 5e-2 * math.sqrt(C / 32.0)
        assert jnp.allclose(y, y_ref, atol=atol, rtol=5e-2), (
            f"mismatch vs reference (C={C})")

    key = jax.random.PRNGKey(0)
    k1, k2 = jax.random.split(key)
    run_case(4, 32, 8, 8, k1)     # im2col path (C < 128), 2 images per step
    run_case(4, 128, 8, 8, k2)    # nine-tap path (C >= 128)
    print("KERNEL_OK")
</pallas_src>

<mosaic_0001>
module attributes {stable_mosaic.version = 11 : i64} {
  func.func @_resblock_kernel_im2col(%arg0: i32, %arg1: memref<2x8x8x32xf32, #tpu.memory_space<vmem>>, %arg2: memref<288x32xbf16, #tpu.memory_space<vmem>>, %arg3: memref<1x32xf32, #tpu.memory_space<vmem>>, %arg4: memref<1x32xf32, #tpu.memory_space<vmem>>, %arg5: memref<1x128x32xf32, #tpu.memory_space<vmem>>, %arg6: memref<2x8x8x288xbf16, #tpu.memory_space<vmem>>) attributes {dimension_semantics = [#tpu.dimension_semantics<parallel>], iteration_bounds = array<i64: 2>, scalar_prefetch = 0 : i64, scratch_operands = 1 : i64, tpu.core_type = #tpu.core_type<tc>, window_params = [{transform_indices = @transform_0, window_bounds = array<i64: 2, 8, 8, 32>}, {pipeline_mode = #tpu.pipeline_mode<synchronous>, transform_indices = @transform_1, window_bounds = array<i64: 288, 32>}, {pipeline_mode = #tpu.pipeline_mode<synchronous>, transform_indices = @transform_2, window_bounds = array<i64: 1, 32>}, {pipeline_mode = #tpu.pipeline_mode<synchronous>, transform_indices = @transform_3, window_bounds = array<i64: 1, 32>}, {transform_indices = @transform_4, window_bounds = array<i64: 1, 128, 32>}]} {
    %c0 = arith.constant 0 : index
    %c0_0 = arith.constant 0 : index
    %c0_1 = arith.constant 0 : index
    %c0_2 = arith.constant 0 : index
    %0 = vector.load %arg1[%c0, %c0_0, %c0_1, %c0_2] : memref<2x8x8x32xf32, #tpu.memory_space<vmem>>, vector<2x8x8x32xf32>
    %1 = arith.truncf %0 : vector<2x8x8x32xf32> to vector<2x8x8x32xbf16>
    %cst = arith.constant 0.000000e+00 : bf16
    %2 = vector.broadcast %cst : bf16 to vector<2x8x8x288xbf16>
    %c0_3 = arith.constant 0 : index
    %c0_4 = arith.constant 0 : index
    %c0_5 = arith.constant 0 : index
    %c0_6 = arith.constant 0 : index
    %3 = vector.load %arg6[%c0_3, %c0_4, %c0_5, %c0_6] : memref<2x8x8x288xbf16, #tpu.memory_space<vmem>>, vector<2x8x8x288xbf16>
    tpu.vector_store %arg6[%c0_3, %c0_4, %c0_5, %c0_6], %2 {strides = array<i32>} : memref<2x8x8x288xbf16, #tpu.memory_space<vmem>>, vector<2x8x8x288xbf16>,
    %4 = vector.extract_strided_slice %1 {offsets = [0, 0, 0, 0], sizes = [2, 7, 7, 32], strides = [1, 1, 1, 1]} : vector<2x8x8x32xbf16> to vector<2x7x7x32xbf16>
    %c0_7 = arith.constant 0 : index
    %c1 = arith.constant 1 : index
    %c1_8 = arith.constant 1 : index
    %c0_9 = arith.constant 0 : index
    %5 = vector.load %arg6[%c0_7, %c1, %c1_8, %c0_9] : memref<2x8x8x288xbf16, #tpu.memory_space<vmem>>, vector<2x7x7x32xbf16>
    tpu.vector_store %arg6[%c0_7, %c1, %c1_8, %c0_9], %4 {strides = array<i32>} : memref<2x8x8x288xbf16, #tpu.memory_space<vmem>>, vector<2x7x7x32xbf16>,
    %6 = vector.extract_strided_slice %1 {offsets = [0, 0, 0, 0], sizes = [2, 7, 8, 32], strides = [1, 1, 1, 1]} : vector<2x8x8x32xbf16> to vector<2x7x8x32xbf16>
    %c0_10 = arith.constant 0 : index
    %c1_11 = arith.constant 1 : index
    %c0_12 = arith.constant 0 : index
    %c32 = arith.constant 32 : index
    %7 = vector.load %arg6[%c0_10, %c1_11, %c0_12, %c32] : memref<2x8x8x288xbf16, #tpu.memory_space<vmem>>, vector<2x7x8x32xbf16>
    tpu.vector_store %arg6[%c0_10, %c1_11, %c0_12, %c32], %6 {strides = array<i32>} : memref<2x8x8x288xbf16, #tpu.memory_space<vmem>>, vector<2x7x8x32xbf16>,
    %8 = vector.extract_strided_slice %1 {offsets = [0, 0, 1, 0], sizes = [2, 7, 7, 32], strides = [1, 1, 1, 1]} : vector<2x8x8x32xbf16> to vector<2x7x7x32xbf16>
    %c0_13 = arith.constant 0 : index
    %c1_14 = arith.constant 1 : index
    %c0_15 = arith.constant 0 : index
    %c64 = arith.constant 64 : index
    %9 = vector.load %arg6[%c0_13, %c1_14, %c0_15, %c64] : memref<2x8x8x288xbf16, #tpu.memory_space<vmem>>, vector<2x7x7x32xbf16>
    tpu.vector_store %arg6[%c0_13, %c1_14, %c0_15, %c64], %8 {strides = array<i32>} : memref<2x8x8x288xbf16, #tpu.memory_space<vmem>>, vector<2x7x7x32xbf16>,
    %10 = vector.extract_strided_slice %1 {offsets = [0, 0, 0, 0], sizes = [2, 8, 7, 32], strides = [1, 1, 1, 1]} : vector<2x8x8x32xbf16> to vector<2x8x7x32xbf16>
    %c0_16 = arith.constant 0 : index
    %c0_17 = arith.constant 0 : index
    %c1_18 = arith.constant 1 : index
    %c96 = arith.constant 96 : index
    %11 = vector.load %arg6[%c0_16, %c0_17, %c1_18, %c96] : memref<2x8x8x288xbf16, #tpu.memory_space<vmem>>, vector<2x8x7x32xbf16>
    tpu.vector_store %arg6[%c0_16, %c0_17, %c1_18, %c96], %10 {strides = array<i32>} : memref<2x8x8x288xbf16, #tpu.memory_space<vmem>>, vector<2x8x7x32xbf16>,
    %c0_19 = arith.constant 0 : index
    %c0_20 = arith.constant 0 : index
    %c0_21 = arith.constant 0 : index
    %c128 = arith.constant 128 : index
    %12 = vector.load %arg6[%c0_19, %c0_20, %c0_21, %c128] : memref<2x8x8x288xbf16, #tpu.memory_space<vmem>>, vector<2x8x8x32xbf16>
    tpu.vector_store %arg6[%c0_19, %c0_20, %c0_21, %c128], %1 {strides = array<i32>} : memref<2x8x8x288xbf16, #tpu.memory_space<vmem>>, vector<2x8x8x32xbf16>,
    %13 = vector.extract_strided_slice %1 {offsets = [0, 0, 1, 0], sizes = [2, 8, 7, 32], strides = [1, 1, 1, 1]} : vector<2x8x8x32xbf16> to vector<2x8x7x32xbf16>
    %c0_22 = arith.constant 0 : index
    %c0_23 = arith.constant 0 : index
    %c0_24 = arith.constant 0 : index
    %c160 = arith.constant 160 : index
    %14 = vector.load %arg6[%c0_22, %c0_23, %c0_24, %c160] : memref<2x8x8x288xbf16, #tpu.memory_space<vmem>>, vector<2x8x7x32xbf16>
    tpu.vector_store %arg6[%c0_22, %c0_23, %c0_24, %c160], %13 {strides = array<i32>} : memref<2x8x8x288xbf16, #tpu.memory_space<vmem>>, vector<2x8x7x32xbf16>,
    %15 = vector.extract_strided_slice %1 {offsets = [0, 1, 0, 0], sizes = [2, 7, 7, 32], strides = [1, 1, 1, 1]} : vector<2x8x8x32xbf16> to vector<2x7x7x32xbf16>
    %c0_25 = arith.constant 0 : index
    %c0_26 = arith.constant 0 : index
    %c1_27 = arith.constant 1 : index
    %c192 = arith.constant 192 : index
    %16 = vector.load %arg6[%c0_25, %c0_26, %c1_27, %c192] : memref<2x8x8x288xbf16, #tpu.memory_space<vmem>>, vector<2x7x7x32xbf16>
    tpu.vector_store %arg6[%c0_25, %c0_26, %c1_27, %c192], %15 {strides = array<i32>} : memref<2x8x8x288xbf16, #tpu.memory_space<vmem>>, vector<2x7x7x32xbf16>,
    %17 = vector.extract_strided_slice %1 {offsets = [0, 1, 0, 0], sizes = [2, 7, 8, 32], strides = [1, 1, 1, 1]} : vector<2x8x8x32xbf16> to vector<2x7x8x32xbf16>
    %c0_28 = arith.constant 0 : index
    %c0_29 = arith.constant 0 : index
    %c0_30 = arith.constant 0 : index
    %c224 = arith.constant 224 : index
    %18 = vector.load %arg6[%c0_28, %c0_29, %c0_30, %c224] : memref<2x8x8x288xbf16, #tpu.memory_space<vmem>>, vector<2x7x8x32xbf16>
    tpu.vector_store %arg6[%c0_28, %c0_29, %c0_30, %c224], %17 {strides = array<i32>} : memref<2x8x8x288xbf16, #tpu.memory_space<vmem>>, vector<2x7x8x32xbf16>,
    %19 = vector.extract_strided_slice %1 {offsets = [0, 1, 1, 0], sizes = [2, 7, 7, 32], strides = [1, 1, 1, 1]} : vector<2x8x8x32xbf16> to vector<2x7x7x32xbf16>
    %c0_31 = arith.constant 0 : index
    %c0_32 = arith.constant 0 : index
    %c0_33 = arith.constant 0 : index
    %c256 = arith.constant 256 : index
    %20 = vector.load %arg6[%c0_31, %c0_32, %c0_33, %c256] : memref<2x8x8x288xbf16, #tpu.memory_space<vmem>>, vector<2x7x7x32xbf16>
    tpu.vector_store %arg6[%c0_31, %c0_32, %c0_33, %c256], %19 {strides = array<i32>} : memref<2x8x8x288xbf16, #tpu.memory_space<vmem>>, vector<2x7x7x32xbf16>,
    %c0_34 = arith.constant 0 : index
    %c0_35 = arith.constant 0 : index
    %c0_36 = arith.constant 0 : index
    %c0_37 = arith.constant 0 : index
    %21 = vector.load %arg6[%c0_34, %c0_35, %c0_36, %c0_37] : memref<2x8x8x288xbf16, #tpu.memory_space<vmem>>, vector<2x8x8x288xbf16>
    %22 = vector.shape_cast %21 : vector<2x8x8x288xbf16> to vector<128x288xbf16>
    %c0_38 = arith.constant 0 : index
    %c0_39 = arith.constant 0 : index
    %23 = vector.load %arg2[%c0_38, %c0_39] : memref<288x32xbf16, #tpu.memory_space<vmem>>, vector<288x32xbf16>
    %cst_40 = arith.constant dense<0.000000e+00> : vector<128x32xf32>
    %24 = tpu.matmul %22, %23, %cst_40 {dimension_numbers = #tpu.dot_dimension_numbers<[1], [0], [0], [1], [0, 0, 1, 1], [], []>} : vector<128x288xbf16>, vector<288x32xbf16>, vector<128x32xf32> -> vector<128x32xf32>
    %c0_41 = arith.constant 0 : index
    %c0_42 = arith.constant 0 : index
    %25 = vector.load %arg3[%c0_41, %c0_42] : memref<1x32xf32, #tpu.memory_space<vmem>>, vector<1x32xf32>
    %26 = vector.shape_cast %25 : vector<1x32xf32> to vector<32xf32>
    %27 = vector.shape_cast %26 : vector<32xf32> to vector<1x32xf32>
    %28 = vector.broadcast %27 : vector<1x32xf32> to vector<128x32xf32>
    %29 = arith.mulf %24, %28 : vector<128x32xf32>
    %c0_43 = arith.constant 0 : index
    %c0_44 = arith.constant 0 : index
    %30 = vector.load %arg4[%c0_43, %c0_44] : memref<1x32xf32, #tpu.memory_space<vmem>>, vector<1x32xf32>
    %31 = vector.shape_cast %30 : vector<1x32xf32> to vector<32xf32>
    %32 = vector.shape_cast %31 : vector<32xf32> to vector<1x32xf32>
    %33 = vector.broadcast %32 : vector<1x32xf32> to vector<128x32xf32>
    %34 = arith.addf %29, %33 : vector<128x32xf32>
    %35 = vector.shape_cast %0 : vector<2x8x8x32xf32> to vector<128x32xf32>
    %36 = arith.addf %35, %34 : vector<128x32xf32>
    %cst_45 = arith.constant 0.000000e+00 : f32
    %37 = vector.broadcast %cst_45 : f32 to vector<128x32xf32>
    %38 = arith.maximumf %36, %37 : vector<128x32xf32>
    %c0_46 = arith.constant 0 : index
    %c0_47 = arith.constant 0 : index
    %c0_48 = arith.constant 0 : index
    %39 = vector.load %arg5[%c0_46, %c0_47, %c0_48] : memref<1x128x32xf32, #tpu.memory_space<vmem>>, vector<1x128x32xf32>
    %40 = vector.shape_cast %39 : vector<1x128x32xf32> to vector<128x32xf32>
    %41 = vector.shape_cast %38 : vector<128x32xf32> to vector<1x128x32xf32>
    tpu.vector_store %arg5[%c0_46, %c0_47, %c0_48], %41 {strides = array<i32>} : memref<1x128x32xf32, #tpu.memory_space<vmem>>, vector<1x128x32xf32>,
    return
  }
  func.func @transform_0(%arg0: i32) -> (i32, i32, i32, i32) {
    %c0_i32 = arith.constant 0 : i32
    %c0_i32_0 = arith.constant 0 : i32
    %c0_i32_1 = arith.constant 0 : i32
    %c0_i32_2 = arith.constant 0 : i32
    return %arg0, %c0_i32, %c0_i32_0, %c0_i32_1 : i32, i32, i32, i32
  }
  func.func @transform_1(%arg0: i32) -> (i32, i32) {
    %c0_i32 = arith.constant 0 : i32
    %c0_i32_0 = arith.constant 0 : i32
    %c0_i32_1 = arith.constant 0 : i32
    return %c0_i32, %c0_i32_0 : i32, i32
  }
  func.func @transform_2(%arg0: i32) -> (i32, i32) {
    %c0_i32 = arith.constant 0 : i32
    %c0_i32_0 = arith.constant 0 : i32
    %c0_i32_1 = arith.constant 0 : i32
    return %c0_i32, %c0_i32_0 : i32, i32
  }
  func.func @transform_3(%arg0: i32) -> (i32, i32) {
    %c0_i32 = arith.constant 0 : i32
    %c0_i32_0 = arith.constant 0 : i32
    %c0_i32_1 = arith.constant 0 : i32
    return %c0_i32, %c0_i32_0 : i32, i32
  }
  func.func @transform_4(%arg0: i32) -> (i32, i32, i32) {
    %c0_i32 = arith.constant 0 : i32
    %c0_i32_0 = arith.constant 0 : i32
    %c0_i32_1 = arith.constant 0 : i32
    return %arg0, %c0_i32, %c0_i32_0 : i32, i32, i32
  }
}

</mosaic_0001>

<llo_original>
// kernel: tpu_custom_call.1
$region0: #{tpu_custom_call.1}
  #allocation0 [shape = 'u32[]', space=smem, size = 0x4, offset = 0x4, fixed_abs, tag = 'smem constant byte address 0x4 - core index']
  #allocation1 [shape = 'u32[144,128]{1,0:T(1,128)}', space=vmem, size = 0x12000, scoped, tag = 'internal scratch']
  #allocation2 [shape = 'bf16[2,8,8,288]{3,2,1,0:T(8,128)(2,1)}', space=vmem, size = 0x18000, scoped, tag = 'scratch operand']
  %s0 = inlined_call_operand.hbm [shape: f32[4,8,8,32], index: 0, kind: input, shape index: {}]
  %s1 = inlined_call_operand.vmem [shape: bf16[288,32], index: 1, kind: input, shape index: {}]
  %s2 = inlined_call_operand.vmem [shape: f32[1,32], index: 2, kind: input, shape index: {}]
  %s3 = inlined_call_operand.vmem [shape: f32[1,32], index: 3, kind: input, shape index: {}]
  %s4 = inlined_call_operand.vmem [shape: f32[2,128,32], index: 4, kind: output, shape index: {}]
  %s5 = sld [smem:[#allocation0]]
  $region53: #{tpu_custom_call.1} parent=0
    _
  %s7 = ssub.s32 1, %s5
  %s8 = scalar_select 0, %s7, %s5
  $region1: #{tpu_custom_call.1} parent=0
    #allocation3 [shape = 'u8[131072]{0}', space=vmem, size = 0x20000, scoped, tag = 'input window, operand 0']
    #allocation4 [shape = 's32[2]{0}', space=sflag, size = 0x8, scoped, tag = 'scoped memory for tpu_custom_call.1']
    %9 = vsyncpa [#allocation4], 0
    %s10 = scalar_lea.sflag [#allocation4], 1
    %11 = vsyncpa %s10, 0
    loop: start=0, step=1, limit=4
    $region2: #{tpu_custom_call.1} parent=1 // loop_pre_header
      _
    $region3: #{tpu_custom_call.1} parent=1 // loop_header
      %s13 = sphi 0, %s17
      %p14 = scmp.ge.s32.totalorder %s13, 4
      %s23 = sphi 0, %s25
      %s26 = sphi 0, %s23
      %s27 = sphi 0, %s26
      %s43 = sphi 0, %s27
      %s47 = sphi 0, %s47
      %s49 = sphi 0, %s47
      %s50 = sphi 0, %s49
      %s64 = sphi 0, %s50
      %s68 = sphi 0, %s68
      %s70 = sphi 0, %s68
      %s71 = sphi 0, %s70
      %s85 = sphi 0, %s71
      %s89 = sphi 0, %s89
      %s91 = sphi 0, %s89
      %s92 = sphi 0, %s91
      %s106 = sphi 0, %s92
      %s112 = sphi 0, %s114
      %s115 = sphi 0, %s112
      %s116 = sphi 0, %s115
      %s132 = sphi 0, %s116
    $region4: #{tpu_custom_call.1} parent=1 // loop_header_branch
      %16 = sbr.rel (%p14) target = $region8
    $region5: #{tpu_custom_call.1} parent=1 // loop_body
      %s18 = ssub.s32 %s13, 1
      %s19 = ssub.s32 %s13, 2
      %s20 = sadd.s32 %s13, 1
      %s21 = ssub.s32 %s13, %s20
      %p22 = scmp.eq.s32.totalorder %s21, 0
      %s24 = sadd.s32 %s23, 1
      %s25 = scalar_select %p22, %s23, %s24
      %p28 = pneg %p22
      %p29 = scmp.eq.s32.totalorder %s13, 1
      %p30 = por %p28, %p29
      %p31 = scmp.ne.s32.totalorder %s23, %s26
      %p32 = scmp.eq.s32.totalorder %s13, 0
      %p33 = por %p31, %p32
      %p34 = scmp.ne.s32.totalorder %s23, %s26
      %p35 = scmp.eq.s32.totalorder %s18, 1
      %p36 = por %p34, %p35
      %p37 = scmp.ne.s32.totalorder %s26, %s27
      %p38 = scmp.eq.s32.totalorder %s18, 0
      %p39 = por %p37, %p38
      %p40 = scmp.ne.s32.totalorder %s26, %s27
      %p41 = scmp.eq.s32.totalorder %s19, 1
      %p42 = por %p40, %p41
      %p44 = scmp.ne.s32.totalorder %s27, %s43
      %p45 = scmp.eq.s32.totalorder %s19, 0
      %p46 = por %p44, %p45
      %s48 = sadd.s32 %s47, 1
      %p51 = scmp.eq.s32.totalorder %s13, 1
      %p52 = scmp.ne.s32.totalorder %s47, %s49
      %p53 = scmp.eq.s32.totalorder %s13, 0
      %p54 = por %p52, %p53
      %p55 = scmp.ne.s32.totalorder %s47, %s49
      %p56 = scmp.eq.s32.totalorder %s18, 1
      %p57 = por %p55, %p56
      %p58 = scmp.ne.s32.totalorder %s49, %s50
      %p59 = scmp.eq.s32.totalorder %s18, 0
      %p60 = por %p58, %p59
      %p61 = scmp.ne.s32.totalorder %s49, %s50
      %p62 = scmp.eq.s32.totalorder %s19, 1
      %p63 = por %p61, %p62
      %p65 = scmp.ne.s32.totalorder %s50, %s64
      %p66 = scmp.eq.s32.totalorder %s19, 0
      %p67 = por %p65, %p66
      %s69 = sadd.s32 %s68, 1
      %p72 = scmp.eq.s32.totalorder %s13, 1
      %p73 = scmp.ne.s32.totalorder %s68, %s70
      %p74 = scmp.eq.s32.totalorder %s13, 0
      %p75 = por %p73, %p74
      %p76 = scmp.ne.s32.totalorder %s68, %s70
      %p77 = scmp.eq.s32.totalorder %s18, 1
      %p78 = por %p76, %p77
      %p79 = scmp.ne.s32.totalorder %s70, %s71
      %p80 = scmp.eq.s32.totalorder %s18, 0
      %p81 = por %p79, %p80
      %p82 = scmp.ne.s32.totalorder %s70, %s71
      %p83 = scmp.eq.s32.totalorder %s19, 1
      %p84 = por %p82, %p83
      %p86 = scmp.ne.s32.totalorder %s71, %s85
      %p87 = scmp.eq.s32.totalorder %s19, 0
      %p88 = por %p86, %p87
      %s90 = sadd.s32 %s89, 1
      %p93 = scmp.eq.s32.totalorder %s13, 1
      %p94 = scmp.ne.s32.totalorder %s89, %s91
      %p95 = scmp.eq.s32.totalorder %s13, 0
      %p96 = por %p94, %p95
      %p97 = scmp.ne.s32.totalorder %s89, %s91
      %p98 = scmp.eq.s32.totalorder %s18, 1
      %p99 = por %p97, %p98
      %p100 = scmp.ne.s32.totalorder %s91, %s92
      %p101 = scmp.eq.s32.totalorder %s18, 0
      %p102 = por %p100, %p101
      %p103 = scmp.ne.s32.totalorder %s91, %s92
      %p104 = scmp.eq.s32.totalorder %s19, 1
      %p105 = por %p103, %p104
      %p107 = scmp.ne.s32.totalorder %s92, %s106
      %p108 = scmp.eq.s32.totalorder %s19, 0
      %p109 = por %p107, %p108
      %s110 = ssub.s32 %s13, %s20
      %p111 = scmp.eq.s32.totalorder %s110, 0
      %s113 = sadd.s32 %s112, 1
      %s114 = scalar_select %p111, %s112, %s113
      %p117 = pneg %p111
      %p118 = scmp.eq.s32.totalorder %s13, 1
      %p119 = por %p117, %p118
      %p120 = scmp.ne.s32.totalorder %s112, %s115
      %p121 = scmp.eq.s32.totalorder %s13, 0
      %p122 = por %p120, %p121
      %p123 = scmp.ne.s32.totalorder %s112, %s115
      %p124 = scmp.eq.s32.totalorder %s18, 1
      %p125 = por %p123, %p124
      %p126 = scmp.ne.s32.totalorder %s115, %s116
      %p127 = scmp.eq.s32.totalorder %s18, 0
      %p128 = por %p126, %p127
      %p129 = scmp.ne.s32.totalorder %s115, %s116
      %p130 = scmp.eq.s32.totalorder %s19, 1
      %p131 = por %p129, %p130
      %p133 = scmp.ne.s32.totalorder %s116, %s132
      %p134 = scmp.eq.s32.totalorder %s19, 0
      %p135 = por %p133, %p134
      %p136 = scmp.le.s32.totalorder 1, %s13
      %p137 = scmp.lt.s32.totalorder %s13, 3
      %p138 = pnand %p136, %p137
      %p139 = pneg %p138
      // Predicated region
      $region9: #{tpu_custom_call.1} parent=5 // pred_check
        _
      $region10: #{tpu_custom_call.1} parent=5 // pred_check_branch
        %141 = sbr.rel (%p138) target = $region12
      $region11: #{tpu_custom_call.1} parent=5 // pred_region
        %s142 = ssub.s32 %s13, 1
        // Predicated region
        $region13: #{tpu_custom_call.1} parent=11 // pred_check
          %p143 = pneg %p60
        $region14: #{tpu_custom_call.1} parent=11 // pred_check_branch
          %145 = sbr.rel (%p143) target = $region16
        $region15: #{tpu_custom_call.1} parent=11 // pred_region
          _
        $region16: #{tpu_custom_call.1} parent=11 // pred_fallthru
          _
        // Predicated region
        $region17: #{tpu_custom_call.1} parent=11 // pred_check
          %p146 = pneg %p81
        $region18: #{tpu_custom_call.1} parent=11 // pred_check_branch
          %148 = sbr.rel (%p146) target = $region20
        $region19: #{tpu_custom_call.1} parent=11 // pred_region
          _
        $region20: #{tpu_custom_call.1} parent=11 // pred_fallthru
          _
        // Predicated region
        $region21: #{tpu_custom_call.1} parent=11 // pred_check
          %p149 = pneg %p102
        $region22: #{tpu_custom_call.1} parent=11 // pred_check_branch
          %151 = sbr.rel (%p149) target = $region24
        $region23: #{tpu_custom_call.1} parent=11 // pred_region
          _
        $region24: #{tpu_custom_call.1} parent=11 // pred_fallthru
          _
      $region12: #{tpu_custom_call.1} parent=5 // pred_fallthru
        _
      %p152 = scmp.lt.s32.totalorder %s13, 2
      // Predicated region
      $region25: #{tpu_custom_call.1} parent=5 // pred_check
        %p153 = pneg %p152
      $region26: #{tpu_custom_call.1} parent=5 // pred_check_branch
        %155 = sbr.rel (%p153) target = $region28
      $region27: #{tpu_custom_call.1} parent=5 // pred_region
        // Predicated region
        $region29: #{tpu_custom_call.1} parent=27 // pred_check
          %p156 = pneg %p33
        $region30: #{tpu_custom_call.1} parent=27 // pred_check_branch
          %158 = sbr.rel (%p156) target = $region32
        $region31: #{tpu_custom_call.1} parent=27 // pred_region
          %s159 = sand.u32 %s23, 1
          %s160 = scalar_lea.sflag [#allocation4], %s159
          %s161 = sand.u32 %s23, 1
          %s162 = smul.addr %s161, 128
          %s163 = scalar_lea.vmem [#allocation3], %s162
          %s164 = smul.u32 2, %s13
          %s166 = ssub.s32 2048, 2048
          %167 = vsyncadd %s160, %s166
          %s168 = smul.addr %s164, 8
          %s169 = smul.addr %s168, 128
          %s170 = scalar_lea.hbm %s0, %s169
          %s171 = sshll.u32 %s163, 4
          %s172 = int_to_ptr.vmem [resolvable:$true] %s171
          %177 = dma.hbm_to_vmem [thread:$0]  %s170, 2048, %s172, %s160, 128, 128, 8
        $region32: #{tpu_custom_call.1} parent=27 // pred_fallthru
          _
      $region28: #{tpu_custom_call.1} parent=5 // pred_fallthru
        _
      %p178 = scmp.le.s32.totalorder 1, %s13
      %p179 = scmp.lt.s32.totalorder %s13, 3
      %p180 = pnand %p178, %p179
      %p181 = pneg %p180
      // Predicated region
      $region33: #{tpu_custom_call.1} parent=5 // pred_check
        _
      $region34: #{tpu_custom_call.1} parent=5 // pred_check_branch
        %183 = sbr.rel (%p180) target = $region36
      $region35: #{tpu_custom_call.1} parent=5 // pred_region
        %s184 = ssub.s32 %s13, 1
        %s185 = sand.u32 %s26, 1
        %s186 = scalar_lea.sflag [#allocation4], %s185
        %s187 = sand.u32 %s26, 1
        %s188 = smul.addr %s187, 128
        %s189 = scalar_lea.vmem [#allocation3], %s188
        // Predicated region
        $region37: #{tpu_custom_call.1} parent=35 // pred_check
          %p190 = pneg %p39
        $region38: #{tpu_custom_call.1} parent=35 // pred_check_branch
          %192 = sbr.rel (%p190) target = $region40
        $region39: #{tpu_custom_call.1} parent=35 // pred_region
          %193 = dma.done %s186, 2048
        $region40: #{tpu_custom_call.1} parent=35 // pred_fallthru
          _
        %s194 = sand.u32 %s26, 1
        %s195 = scalar_lea.sflag [#allocation4], %s194
        %s196 = sand.u32 %s26, 1
        %s197 = smul.addr %s196, 128
        %s198 = scalar_lea.vmem [#allocation3], %s197
        %p199 = pneg %p39
        %p200 = pneg %p36
        %p201 = pneg %p60
        %p202 = pneg %p57
        %p203 = pneg %p81
        %p204 = pneg %p78
        %p205 = pneg %p102
        %p206 = pneg %p99
        %p207 = pneg %p128
        %p208 = pneg %p125
        %p209 = scmp.lt.s32.totalorder %s18, 1
        %s210 = scalar_select %p209, %s18, 1
        %s211 = smul.addr %s210, 16
        %s212 = smul.addr %s211, 8
        %s213 = scalar_lea.vmem %s4, %s212
        %s214 = smul.u32 2, %s18
        %p215 = scmp.lt.s32.totalorder %s18, 1
        %s216 = scalar_select %p215, %s18, 1
        %s217 = smul.addr %s216, 16
        %s218 = smul.addr %s217, 8
        %s219 = scalar_lea.vmem %s4, %s218
        %v221 = vld [vmem:[%s189] sm:$0xff]
        %v222 = vld [vmem:[%s189 + $0x8] sm:$0xff]
        %v223 = vld [vmem:[%s189 + $0x10] sm:$0xff]
        %v224 = vld [vmem:[%s189 + $0x18] sm:$0xff]
        %v225 = vld [vmem:[%s189 + $0x20] sm:$0xff]
        %v226 = vld [vmem:[%s189 + $0x28] sm:$0xff]
        %v227 = vld [vmem:[%s189 + $0x30] sm:$0xff]
        %v228 = vld [vmem:[%s189 + $0x38] sm:$0xff]
        %v229 = vld [vmem:[%s189 + $0x40] sm:$0xff]
        %v230 = vld [vmem:[%s189 + $0x48] sm:$0xff]
        %v231 = vld [vmem:[%s189 + $0x50] sm:$0xff]
        %v232 = vld [vmem:[%s189 + $0x58] sm:$0xff]
        %v233 = vld [vmem:[%s189 + $0x60] sm:$0xff]
        %v234 = vld [vmem:[%s189 + $0x68] sm:$0xff]
        %v235 = vld [vmem:[%s189 + $0x70] sm:$0xff]
        %v236 = vld [vmem:[%s189 + $0x78] sm:$0xff]
        %v237 = vpack.c.bf16 %v221, %v221
        %v238 = vpack.c.bf16 %v222, %v222
        %v239 = vpack.c.bf16 %v223, %v223
        %v240 = vpack.c.bf16 %v224, %v224
        %v241 = vpack.c.bf16 %v225, %v225
        %v242 = vpack.c.bf16 %v226, %v226
        %v243 = vpack.c.bf16 %v227, %v227
        %v244 = vpack.c.bf16 %v228, %v228
        %v245 = vpack.c.bf16 %v229, %v229
        %v246 = vpack.c.bf16 %v230, %v230
        %v247 = vpack.c.bf16 %v231, %v231
        %v248 = vpack.c.bf16 %v232, %v232
        %v249 = vpack.c.bf16 %v233, %v233
        %v250 = vpack.c.bf16 %v234, %v234
        %v251 = vpack.c.bf16 %v235, %v235
        %v252 = vpack.c.bf16 %v236, %v236
        %253 = vst [vmem:[#allocation2] sm:$0xff] 0
        %vm254 = vcmask 257024
        %255 = vst.msk [vmem:[#allocation2 + $0x8] sm:$0xf] %vm254, 0
        %256 = vst [vmem:[#allocation2 + $0xc] sm:$0xff] 0
        %257 = vst.msk [vmem:[#allocation2 + $0x14] sm:$0xf] %vm254, 0
        %258 = vst [vmem:[#allocation2 + $0x18] sm:$0xff] 0
        %259 = vst.msk [vmem:[#allocation2 + $0x20] sm:$0xf] %vm254, 0
        %260 = vst [vmem:[#allocation2 + $0x24] sm:$0xff] 0
        %261 = vst.msk [vmem:[#allocation2 + $0x2c] sm:$0xf] %vm254, 0
        %262 = vst [vmem:[#allocation2 + $0x30] sm:$0xff] 0
        %263 = vst.msk [vmem:[#allocation2 + $0x38] sm:$0xf] %vm254, 0
        %264 = vst [vmem:[#allocation2 + $0x3c] sm:$0xff] 0
        %265 = vst.msk [vmem:[#allocation2 + $0x44] sm:$0xf] %vm254, 0
        %266 = vst [vmem:[#allocation2 + $0x48] sm:$0xff] 0
        %267 = vst.msk [vmem:[#allocation2 + $0x50] sm:$0xf] %vm254, 0
        %268 = vst [vmem:[#allocation2 + $0x54] sm:$0xff] 0
        %269 = vst.msk [vmem:[#allocation2 + $0x5c] sm:$0xf] %vm254, 0
        %270 = vst [vmem:[#allocation2 + $0x60] sm:$0xff] 0
        %271 = vst.msk [vmem:[#allocation2 + $0x68] sm:$0xf] %vm254, 0
        %272 = vst [vmem:[#allocation2 + $0x6c] sm:$0xff] 0
        %273 = vst.msk [vmem:[#allocation2 + $0x74] sm:$0xf] %vm254, 0
        %274 = vst [vmem:[#allocation2 + $0x78] sm:$0xff] 0
        %275 = vst.msk [vmem:[#allocation2 + $0x80] sm:$0xf] %vm254, 0
        %276 = vst [vmem:[#allocation2 + $0x84] sm:$0xff] 0
        %277 = vst.msk [vmem:[#allocation2 + $0x8c] sm:$0xf] %vm254, 0
        %278 = vst [vmem:[#allocation2 + $0x90] sm:$0xff] 0
        %279 = vst.msk [vmem:[#allocation2 + $0x98] sm:$0xf] %vm254, 0
        %280 = vst [vmem:[#allocation2 + $0x9c] sm:$0xff] 0
        %281 = vst.msk [vmem:[#allocation2 + $0xa4] sm:$0xf] %vm254, 0
        %282 = vst [vmem:[#allocation2 + $0xa8] sm:$0xff] 0
        %283 = vst.msk [vmem:[#allocation2 + $0xb0] sm:$0xf] %vm254, 0
        %284 = vst [vmem:[#allocation2 + $0xb4] sm:$0xff] 0
        %285 = vst.msk [vmem:[#allocation2 + $0xbc] sm:$0xf] %vm254, 0
        %v300 = vunpack.c.l.b16 %v237
        %v301 = vunpack.c.l.b16 %v238
        %v302 = vunpack.c.l.b16 %v239
        %v303 = vunpack.c.l.b16 %v240
        %v304 = vunpack.c.l.b16 %v241
        %v305 = vunpack.c.l.b16 %v242
        %v306 = vunpack.c.l.b16 %v243
        %v307 = vunpack.c.l.b16 %v245
        %v308 = vunpack.c.l.b16 %v246
        %v309 = vunpack.c.l.b16 %v247
        %v310 = vunpack.c.l.b16 %v248
        %v311 = vunpack.c.l.b16 %v249
        %v312 = vunpack.c.l.b16 %v250
        %v313 = vunpack.c.l.b16 %v251
        %v314 = vpack.c.b16 %v300, %v300
        %v315 = vpack.c.b16 %v301, %v301
        %v316 = vpack.c.b16 %v302, %v302
        %v317 = vpack.c.b16 %v303, %v303
        %v318 = vpack.c.b16 %v304, %v304
        %v319 = vpack.c.b16 %v305, %v305
        %v320 = vpack.c.b16 %v306, %v306
        %v321 = vpack.c.b16 %v307, %v307
        %v322 = vpack.c.b16 %v308, %v308
        %v323 = vpack.c.b16 %v309, %v309
        %v324 = vpack.c.b16 %v310, %v310
        %v325 = vpack.c.b16 %v311, %v311
        %v326 = vpack.c.b16 %v312, %v312
        %v327 = vpack.c.b16 %v313, %v313
        %v329 = vshrl.u32 %v314, 16
        %v331 = vrot.slane %v329, 7
        %v332 = vshll.u32 %v314, 16
        %v334 = vor.u32 %v331, %v332
        %v336 = vshrl.u32 %v315, 16
        %v338 = vrot.slane %v336, 7
        %v339 = vshll.u32 %v315, 16
        %v341 = vor.u32 %v338, %v339
        %v343 = vshrl.u32 %v316, 16
        %v345 = vrot.slane %v343, 7
        %v346 = vshll.u32 %v316, 16
        %v348 = vor.u32 %v345, %v346
        %v350 = vshrl.u32 %v317, 16
        %v352 = vrot.slane %v350, 7
        %v353 = vshll.u32 %v317, 16
        %v355 = vor.u32 %v352, %v353
        %v357 = vshrl.u32 %v318, 16
        %v359 = vrot.slane %v357, 7
        %v360 = vshll.u32 %v318, 16
        %v362 = vor.u32 %v359, %v360
        %v364 = vshrl.u32 %v319, 16
        %v366 = vrot.slane %v364, 7
        %v367 = vshll.u32 %v319, 16
        %v369 = vor.u32 %v366, %v367
        %v371 = vshrl.u32 %v320, 16
        %v373 = vrot.slane %v371, 7
        %v374 = vshll.u32 %v320, 16
        %v376 = vor.u32 %v373, %v374
        %v378 = vshrl.u32 %v321, 16
        %v380 = vrot.slane %v378, 7
        %v381 = vshll.u32 %v321, 16
        %v383 = vor.u32 %v380, %v381
        %v385 = vshrl.u32 %v322, 16
        %v387 = vrot.slane %v385, 7
        %v388 = vshll.u32 %v322, 16
        %v390 = vor.u32 %v387, %v388
        %v392 = vshrl.u32 %v323, 16
        %v394 = vrot.slane %v392, 7
        %v395 = vshll.u32 %v323, 16
        %v397 = vor.u32 %v394, %v395
        %v399 = vshrl.u32 %v324, 16
        %v401 = vrot.slane %v399, 7
        %v402 = vshll.u32 %v324, 16
        %v404 = vor.u32 %v401, %v402
        %v406 = vshrl.u32 %v325, 16
        %v408 = vrot.slane %v406, 7
        %v409 = vshll.u32 %v325, 16
        %v411 = vor.u32 %v408, %v409
        %v413 = vshrl.u32 %v326, 16
        %v415 = vrot.slane %v413, 7
        %v416 = vshll.u32 %v326, 16
        %v418 = vor.u32 %v415, %v416
        %v420 = vshrl.u32 %v327, 16
        %v422 = vrot.slane %v420, 7
        %v423 = vshll.u32 %v327, 16
        %v425 = vor.u32 %v422, %v423
        %s440 = scalar_lea.vmem [#allocation2], 12
        %vm441 = vcmask 257024
        %vm442 = vsmask.f32 7938
        %vm443 = vmand %vm441, %vm442
        %v444 = vld [vmem:[%s440] sm:$0xf]
        %v445 = vsel %vm443, %v334, %v444
        %446 = vst [vmem:[%s440] sm:$0xf] %v445
        %v447 = vld [vmem:[%s440 + $0xc] sm:$0xf]
        %v448 = vsel %vm443, %v341, %v447
        %449 = vst [vmem:[%s440 + $0xc] sm:$0xf] %v448
        %v450 = vld [vmem:[%s440 + $0x18] sm:$0xf]
        %v451 = vsel %vm443, %v348, %v450
        %452 = vst [vmem:[%s440 + $0x18] sm:$0xf] %v451
        %v453 = vld [vmem:[%s440 + $0x24] sm:$0xf]
        %v454 = vsel %vm443, %v355, %v453
        %455 = vst [vmem:[%s440 + $0x24] sm:$0xf] %v454
        %v456 = vld [vmem:[%s440 + $0x30] sm:$0xf]
        %v457 = vsel %vm443, %v362, %v456
        %458 = vst [vmem:[%s440 + $0x30] sm:$0xf] %v457
        %v459 = vld [vmem:[%s440 + $0x3c] sm:$0xf]
        %v460 = vsel %vm443, %v369, %v459
        %461 = vst [vmem:[%s440 + $0x3c] sm:$0xf] %v460
        %v462 = vld [vmem:[%s440 + $0x48] sm:$0xf]
        %v463 = vsel %vm443, %v376, %v462
        %464 = vst [vmem:[%s440 + $0x48] sm:$0xf] %v463
        %v465 = vld [vmem:[%s440 + $0x60] sm:$0xf]
        %v466 = vsel %vm443, %v383, %v465
        %467 = vst [vmem:[%s440 + $0x60] sm:$0xf] %v466
        %v468 = vld [vmem:[%s440 + $0x6c] sm:$0xf]
        %v469 = vsel %vm443, %v390, %v468
        %470 = vst [vmem:[%s440 + $0x6c] sm:$0xf] %v469
        %v471 = vld [vmem:[%s440 + $0x78] sm:$0xf]
        %v472 = vsel %vm443, %v397, %v471
        %473 = vst [vmem:[%s440 + $0x78] sm:$0xf] %v472
        %v474 = vld [vmem:[%s440 + $0x84] sm:$0xf]
        %v475 = vsel %vm443, %v404, %v474
        %476 = vst [vmem:[%s440 + $0x84] sm:$0xf] %v475
        %v477 = vld [vmem:[%s440 + $0x90] sm:$0xf]
        %v478 = vsel %vm443, %v411, %v477
        %479 = vst [vmem:[%s440 + $0x90] sm:$0xf] %v478
        %v480 = vld [vmem:[%s440 + $0x9c] sm:$0xf]
        %v481 = vsel %vm443, %v418, %v480
        %482 = vst [vmem:[%s440 + $0x9c] sm:$0xf] %v481
        %v483 = vld [vmem:[%s440 + $0xa8] sm:$0xf]
        %v484 = vsel %vm443, %v425, %v483
        %485 = vst [vmem:[%s440 + $0xa8] sm:$0xf] %v484
        %486 = vrot.lane.b32.xlu0 %v314, 32
        %v487 = vpop.permute.xlu0 %486
        %488 = vrot.lane.b32.xlu0 %v315, 32
        %v489 = vpop.permute.xlu0 %488
        %490 = vrot.lane.b32.xlu0 %v316, 32
        %v491 = vpop.permute.xlu0 %490
        %492 = vrot.lane.b32.xlu0 %v317, 32
        %v493 = vpop.permute.xlu0 %492
        %494 = vrot.lane.b32.xlu0 %v318, 32
        %v495 = vpop.permute.xlu0 %494
        %496 = vrot.lane.b32.xlu0 %v319, 32
        %v497 = vpop.permute.xlu0 %496
        %498 = vrot.lane.b32.xlu0 %v320, 32
        %v499 = vpop.permute.xlu0 %498
        %500 = vrot.lane.b32.xlu0 %v321, 32
        %v501 = vpop.permute.xlu0 %500
        %502 = vrot.lane.b32.xlu0 %v322, 32
        %v503 = vpop.permute.xlu0 %502
        %504 = vrot.lane.b32.xlu0 %v323, 32
        %v505 = vpop.permute.xlu0 %504
        %506 = vrot.lane.b32.xlu0 %v324, 32
        %v507 = vpop.permute.xlu0 %506
        %508 = vrot.lane.b32.xlu0 %v325, 32
        %v509 = vpop.permute.xlu0 %508
        %510 = vrot.lane.b32.xlu0 %v326, 32
        %v511 = vpop.permute.xlu0 %510
        %512 = vrot.lane.b32.xlu0 %v327, 32
        %v513 = vpop.permute.xlu0 %512
        %vm528 = vcmask 519424
        %529 = vst.msk [vmem:[%s440] sm:$0xf] %vm528, %v487
        %530 = vst.msk [vmem:[%s440 + $0xc] sm:$0xf] %vm528, %v489
        %531 = vst.msk [vmem:[%s440 + $0x18] sm:$0xf] %vm528, %v491
        %532 = vst.msk [vmem:[%s440 + $0x24] sm:$0xf] %vm528, %v493
        %533 = vst.msk [vmem:[%s440 + $0x30] sm:$0xf] %vm528, %v495
        %534 = vst.msk [vmem:[%s440 + $0x3c] sm:$0xf] %vm528, %v497
        %535 = vst.msk [vmem:[%s440 + $0x48] sm:$0xf] %vm528, %v499
        %536 = vst.msk [vmem:[%s440 + $0x60] sm:$0xf] %vm528, %v501
        %537 = vst.msk [vmem:[%s440 + $0x6c] sm:$0xf] %vm528, %v503
        %538 = vst.msk [vmem:[%s440 + $0x78] sm:$0xf] %vm528, %v505
        %539 = vst.msk [vmem:[%s440 + $0x84] sm:$0xf] %vm528, %v507
        %540 = vst.msk [vmem:[%s440 + $0x90] sm:$0xf] %vm528, %v509
        %541 = vst.msk [vmem:[%s440 + $0x9c] sm:$0xf] %vm528, %v511
        %542 = vst.msk [vmem:[%s440 + $0xa8] sm:$0xf] %vm528, %v513
        %v543 = vrot.slane %v329, 4
        %v544 = vrot.slane %v332, 5
        %v545 = vor.u32 %v543, %v544
        %v546 = vrot.slane %v545, 4
        %v547 = vrot.slane %v336, 4
        %v548 = vrot.slane %v339, 5
        %v549 = vor.u32 %v547, %v548
        %v550 = vrot.slane %v549, 4
        %v551 = vrot.slane %v343, 4
        %v552 = vrot.slane %v346, 5
        %v553 = vor.u32 %v551, %v552
        %v554 = vrot.slane %v553, 4
        %v555 = vrot.slane %v350, 4
        %v556 = vrot.slane %v353, 5
        %v557 = vor.u32 %v555, %v556
        %v558 = vrot.slane %v557, 4
        %v559 = vrot.slane %v357, 4
        %v560 = vrot.slane %v360, 5
        %v561 = vor.u32 %v559, %v560
        %v562 = vrot.slane %v561, 4
        %v563 = vrot.slane %v364, 4
        %v564 = vrot.slane %v367, 5
        %v565 = vor.u32 %v563, %v564
        %v566 = vrot.slane %v565, 4
        %v567 = vrot.slane %v371, 4
        %v568 = vrot.slane %v374, 5
        %v569 = vor.u32 %v567, %v568
        %v570 = vrot.slane %v569, 4
        %v571 = vrot.slane %v378, 4
        %v572 = vrot.slane %v381, 5
        %v573 = vor.u32 %v571, %v572
        %v574 = vrot.slane %v573, 4
        %v575 = vrot.slane %v385, 4
        %v576 = vrot.slane %v388, 5
        %v577 = vor.u32 %v575, %v576
        %v578 = vrot.slane %v577, 4
        %v579 = vrot.slane %v392, 4
        %v580 = vrot.slane %v395, 5
        %v581 = vor.u32 %v579, %v580
        %v582 = vrot.slane %v581, 4
        %v583 = vrot.slane %v399, 4
        %v584 = vrot.slane %v402, 5
        %v585 = vor.u32 %v583, %v584
        %v586 = vrot.slane %v585, 4
        %v587 = vrot.slane %v406, 4
        %v588 = vrot.slane %v409, 5
        %v589 = vor.u32 %v587, %v588
        %v590 = vrot.slane %v589, 4
        %v591 = vrot.slane %v413, 4
        %v592 = vrot.slane %v416, 5
        %v593 = vor.u32 %v591, %v592
        %v594 = vrot.slane %v593, 4
        %v595 = vrot.slane %v420, 4
        %v596 = vrot.slane %v423, 5
        %v597 = vor.u32 %v595, %v596
        %v598 = vrot.slane %v597, 4
        %599 = vrot.lane.b32.xlu0 %v546, 64
        %v600 = vpop.permute.xlu0 %599
        %601 = vrot.lane.b32.xlu0 %v550, 64
        %v602 = vpop.permute.xlu0 %601
        %603 = vrot.lane.b32.xlu0 %v554, 64
        %v604 = vpop.permute.xlu0 %603
        %605 = vrot.lane.b32.xlu0 %v558, 64
        %v606 = vpop.permute.xlu0 %605
        %607 = vrot.lane.b32.xlu0 %v562, 64
        %v608 = vpop.permute.xlu0 %607
        %609 = vrot.lane.b32.xlu0 %v566, 64
        %v610 = vpop.permute.xlu0 %609
        %611 = vrot.lane.b32.xlu0 %v570, 64
        %v612 = vpop.permute.xlu0 %611
        %613 = vrot.lane.b32.xlu0 %v574, 64
        %v614 = vpop.permute.xlu0 %613
        %615 = vrot.lane.b32.xlu0 %v578, 64
        %v616 = vpop.permute.xlu0 %615
        %617 = vrot.lane.b32.xlu0 %v582, 64
        %v618 = vpop.permute.xlu0 %617
        %619 = vrot.lane.b32.xlu0 %v586, 64
        %v620 = vpop.permute.xlu0 %619
        %621 = vrot.lane.b32.xlu0 %v590, 64
        %v622 = vpop.permute.xlu0 %621
        %623 = vrot.lane.b32.xlu0 %v594, 64
        %v624 = vpop.permute.xlu0 %623
        %625 = vrot.lane.b32.xlu0 %v598, 64
        %v626 = vpop.permute.xlu0 %625
        %vm641 = vcmask 781824
        %vm642 = vsmask.f32 3328
        %vm643 = vmand %vm641, %vm642
        %v644 = vld [vmem:[%s440] sm:$0xf]
        %v645 = vsel %vm643, %v600, %v644
        %646 = vst [vmem:[%s440] sm:$0xf] %v645
        %v647 = vld [vmem:[%s440 + $0xc] sm:$0xf]
        %v648 = vsel %vm643, %v602, %v647
        %649 = vst [vmem:[%s440 + $0xc] sm:$0xf] %v648
        %v650 = vld [vmem:[%s440 + $0x18] sm:$0xf]
        %v651 = vsel %vm643, %v604, %v650
        %652 = vst [vmem:[%s440 + $0x18] sm:$0xf] %v651
        %v653 = vld [vmem:[%s440 + $0x24] sm:$0xf]
        %v654 = vsel %vm643, %v606, %v653
        %655 = vst [vmem:[%s440 + $0x24] sm:$0xf] %v654
        %v656 = vld [vmem:[%s440 + $0x30] sm:$0xf]
        %v657 = vsel %vm643, %v608, %v656
        %658 = vst [vmem:[%s440 + $0x30] sm:$0xf] %v657
        %v659 = vld [vmem:[%s440 + $0x3c] sm:$0xf]
        %v660 = vsel %vm643, %v610, %v659
        %661 = vst [vmem:[%s440 + $0x3c] sm:$0xf] %v660
        %v662 = vld [vmem:[%s440 + $0x48] sm:$0xf]
        %v663 = vsel %vm643, %v612, %v662
        %664 = vst [vmem:[%s440 + $0x48] sm:$0xf] %v663
        %v665 = vld [vmem:[%s440 + $0x60] sm:$0xf]
        %v666 = vsel %vm643, %v614, %v665
        %667 = vst [vmem:[%s440 + $0x60] sm:$0xf] %v666
        %v668 = vld [vmem:[%s440 + $0x6c] sm:$0xf]
        %v669 = vsel %vm643, %v616, %v668
        %670 = vst [vmem:[%s440 + $0x6c] sm:$0xf] %v669
        %v671 = vld [vmem:[%s440 + $0x78] sm:$0xf]
        %v672 = vsel %vm643, %v618, %v671
        %673 = vst [vmem:[%s440 + $0x78] sm:$0xf] %v672
        %v674 = vld [vmem:[%s440 + $0x84] sm:$0xf]
        %v675 = vsel %vm643, %v620, %v674
        %676 = vst [vmem:[%s440 + $0x84] sm:$0xf] %v675
        %v677 = vld [vmem:[%s440 + $0x90] sm:$0xf]
        %v678 = vsel %vm643, %v622, %v677
        %679 = vst [vmem:[%s440 + $0x90] sm:$0xf] %v678
        %v680 = vld [vmem:[%s440 + $0x9c] sm:$0xf]
        %v681 = vsel %vm643, %v624, %v680
        %682 = vst [vmem:[%s440 + $0x9c] sm:$0xf] %v681
        %v683 = vld [vmem:[%s440 + $0xa8] sm:$0xf]
        %v684 = vsel %vm643, %v626, %v683
        %685 = vst [vmem:[%s440 + $0xa8] sm:$0xf] %v684
        %v688 = vunpack.c.l.b16 %v244
        %v689 = vunpack.c.l.b16 %v252
        %v690 = vpack.c.b16 %v688, %v688
        %v691 = vpack.c.b16 %v689, %v689
        %v693 = vshrl.u32 %v690, 16
        %v695 = vrot.slane %v693, 7
        %v696 = vshll.u32 %v690, 16
        %v698 = vor.u32 %v695, %v696
        %v700 = vshrl.u32 %v691, 16
        %v702 = vrot.slane %v700, 7
        %v703 = vshll.u32 %v691, 16
        %v705 = vor.u32 %v702, %v703
        %706 = vrot.lane.b32.xlu0 %v334, 96
        %v707 = vpop.permute.xlu0 %706
        %708 = vrot.lane.b32.xlu0 %v341, 96
        %v709 = vpop.permute.xlu0 %708
        %710 = vrot.lane.b32.xlu0 %v348, 96
        %v711 = vpop.permute.xlu0 %710
        %712 = vrot.lane.b32.xlu0 %v355, 96
        %v713 = vpop.permute.xlu0 %712
        %714 = vrot.lane.b32.xlu0 %v362, 96
        %v715 = vpop.permute.xlu0 %714
        %716 = vrot.lane.b32.xlu0 %v369, 96
        %v717 = vpop.permute.xlu0 %716
        %718 = vrot.lane.b32.xlu0 %v376, 96
        %v719 = vpop.permute.xlu0 %718
        %720 = vrot.lane.b32.xlu0 %v698, 96
        %v721 = vpop.permute.xlu0 %720
        %722 = vrot.lane.b32.xlu0 %v383, 96
        %v723 = vpop.permute.xlu0 %722
        %724 = vrot.lane.b32.xlu0 %v390, 96
        %v725 = vpop.permute.xlu0 %724
        %726 = vrot.lane.b32.xlu0 %v397, 96
        %v727 = vpop.permute.xlu0 %726
        %728 = vrot.lane.b32.xlu0 %v404, 96
        %v729 = vpop.permute.xlu0 %728
        %730 = vrot.lane.b32.xlu0 %v411, 96
        %v731 = vpop.permute.xlu0 %730
        %732 = vrot.lane.b32.xlu0 %v418, 96
        %v733 = vpop.permute.xlu0 %732
        %734 = vrot.lane.b32.xlu0 %v425, 96
        %v735 = vpop.permute.xlu0 %734
        %736 = vrot.lane.b32.xlu0 %v705, 96
        %v737 = vpop.permute.xlu0 %736
        %vm754 = vcmask 1044224
        %vm755 = vmand %vm754, %vm442
        %v756 = vld [vmem:[#allocation2] sm:$0xf]
        %v757 = vsel %vm755, %v707, %v756
        %758 = vst [vmem:[#allocation2] sm:$0xf] %v757
        %v759 = vld [vmem:[#allocation2 + $0xc] sm:$0xf]
        %v760 = vsel %vm755, %v709, %v759
        %761 = vst [vmem:[#allocation2 + $0xc] sm:$0xf] %v760
        %v762 = vld [vmem:[#allocation2 + $0x18] sm:$0xf]
        %v763 = vsel %vm755, %v711, %v762
        %764 = vst [vmem:[#allocation2 + $0x18] sm:$0xf] %v763
        %v765 = vld [vmem:[#allocation2 + $0x24] sm:$0xf]
        %v766 = vsel %vm755, %v713, %v765
        %767 = vst [vmem:[#allocation2 + $0x24] sm:$0xf] %v766
        %v768 = vld [vmem:[#allocation2 + $0x30] sm:$0xf]
        %v769 = vsel %vm755, %v715, %v768
        %770 = vst [vmem:[#allocation2 + $0x30] sm:$0xf] %v769
        %v771 = vld [vmem:[#allocation2 + $0x3c] sm:$0xf]
        %v772 = vsel %vm755, %v717, %v771
        %773 = vst [vmem:[#allocation2 + $0x3c] sm:$0xf] %v772
        %v774 = vld [vmem:[#allocation2 + $0x48] sm:$0xf]
        %v775 = vsel %vm755, %v719, %v774
        %776 = vst [vmem:[#allocation2 + $0x48] sm:$0xf] %v775
        %v777 = vld [vmem:[#allocation2 + $0x54] sm:$0xf]
        %v778 = vsel %vm755, %v721, %v777
        %779 = vst [vmem:[#allocation2 + $0x54] sm:$0xf] %v778
        %v780 = vld [vmem:[#allocation2 + $0x60] sm:$0xf]
        %v781 = vsel %vm755, %v723, %v780
        %782 = vst [vmem:[#allocation2 + $0x60] sm:$0xf] %v781
        %v783 = vld [vmem:[#allocation2 + $0x6c] sm:$0xf]
        %v784 = vsel %vm755, %v725, %v783
        %785 = vst [vmem:[#allocation2 + $0x6c] sm:$0xf] %v784
        %v786 = vld [vmem:[#allocation2 + $0x78] sm:$0xf]
        %v787 = vsel %vm755, %v727, %v786
        %788 = vst [vmem:[#allocation2 + $0x78] sm:$0xf] %v787
        %v789 = vld [vmem:[#allocation2 + $0x84] sm:$0xf]
        %v790 = vsel %vm755, %v729, %v789
        %791 = vst [vmem:[#allocation2 + $0x84] sm:$0xf] %v790
        %v792 = vld [vmem:[#allocation2 + $0x90] sm:$0xf]
        %v793 = vsel %vm755, %v731, %v792
        %794 = vst [vmem:[#allocation2 + $0x90] sm:$0xf] %v793
        %v795 = vld [vmem:[#allocation2 + $0x9c] sm:$0xf]
        %v796 = vsel %vm755, %v733, %v795
        %797 = vst [vmem:[#allocation2 + $0x9c] sm:$0xf] %v796
        %v798 = vld [vmem:[#allocation2 + $0xa8] sm:$0xf]
        %v799 = vsel %vm755, %v735, %v798
        %800 = vst [vmem:[#allocation2 + $0xa8] sm:$0xf] %v799
        %v801 = vld [vmem:[#allocation2 + $0xb4] sm:$0xf]
        %v802 = vsel %vm755, %v737, %v801
        %803 = vst [vmem:[#allocation2 + $0xb4] sm:$0xf] %v802
        %804 = vst.msk [vmem:[#allocation2 + $0x4] sm:$0xf] %vm254, %v237
        %805 = vst.msk [vmem:[#allocation2 + $0x10] sm:$0xf] %vm254, %v238
        %806 = vst.msk [vmem:[#allocation2 + $0x1c] sm:$0xf] %vm254, %v239
        %807 = vst.msk [vmem:[#allocation2 + $0x28] sm:$0xf] %vm254, %v240
        %808 = vst.msk [vmem:[#allocation2 + $0x34] sm:$0xf] %vm254, %v241
        %809 = vst.msk [vmem:[#allocation2 + $0x40] sm:$0xf] %vm254, %v242
        %810 = vst.msk [vmem:[#allocation2 + $0x4c] sm:$0xf] %vm254, %v243
        %811 = vst.msk [vmem:[#allocation2 + $0x58] sm:$0xf] %vm254, %v244
        %812 = vst.msk [vmem:[#allocation2 + $0x64] sm:$0xf] %vm254, %v245
        %813 = vst.msk [vmem:[#allocation2 + $0x70] sm:$0xf] %vm254, %v246
        %814 = vst.msk [vmem:[#allocation2 + $0x7c] sm:$0xf] %vm254, %v247
        %815 = vst.msk [vmem:[#allocation2 + $0x88] sm:$0xf] %vm254, %v248
        %816 = vst.msk [vmem:[#allocation2 + $0x94] sm:$0xf] %vm254, %v249
        %817 = vst.msk [vmem:[#allocation2 + $0xa0] sm:$0xf] %vm254, %v250
        %818 = vst.msk [vmem:[#allocation2 + $0xac] sm:$0xf] %vm254, %v251
        %819 = vst.msk [vmem:[#allocation2 + $0xb8] sm:$0xf] %vm254, %v252
        %v820 = vrot.slane %v693, 4
        %v821 = vrot.slane %v696, 5
        %v822 = vor.u32 %v820, %v821
        %v823 = vrot.slane %v822, 4
        %v824 = vrot.slane %v700, 4
        %v825 = vrot.slane %v703, 5
        %v826 = vor.u32 %v824, %v825
        %v827 = vrot.slane %v826, 4
        %828 = vrot.lane.b32.xlu0 %v546, 32
        %v829 = vpop.permute.xlu0 %828
        %830 = vrot.lane.b32.xlu0 %v550, 32
        %v831 = vpop.permute.xlu0 %830
        %832 = vrot.lane.b32.xlu0 %v554, 32
        %v833 = vpop.permute.xlu0 %832
        %834 = vrot.lane.b32.xlu0 %v558, 32
        %v835 = vpop.permute.xlu0 %834
        %836 = vrot.lane.b32.xlu0 %v562, 32
        %v837 = vpop.permute.xlu0 %836
        %838 = vrot.lane.b32.xlu0 %v566, 32
        %v839 = vpop.permute.xlu0 %838
        %840 = vrot.lane.b32.xlu0 %v570, 32
        %v841 = vpop.permute.xlu0 %840
        %842 = vrot.lane.b32.xlu0 %v823, 32
        %v843 = vpop.permute.xlu0 %842
        %844 = vrot.lane.b32.xlu0 %v574, 32
        %v845 = vpop.permute.xlu0 %844
        %846 = vrot.lane.b32.xlu0 %v578, 32
        %v847 = vpop.permute.xlu0 %846
        %848 = vrot.lane.b32.xlu0 %v582, 32
        %v849 = vpop.permute.xlu0 %848
        %850 = vrot.lane.b32.xlu0 %v586, 32
        %v851 = vpop.permute.xlu0 %850
        %852 = vrot.lane.b32.xlu0 %v590, 32
        %v853 = vpop.permute.xlu0 %852
        %854 = vrot.lane.b32.xlu0 %v594, 32
        %v855 = vpop.permute.xlu0 %854
        %856 = vrot.lane.b32.xlu0 %v598, 32
        %v857 = vpop.permute.xlu0 %856
        %858 = vrot.lane.b32.xlu0 %v827, 32
        %v859 = vpop.permute.xlu0 %858
        %vm876 = vcmask 519424
        %vm877 = vmand %vm876, %vm642
        %v878 = vld [vmem:[#allocation2 + $0x4] sm:$0xf]
        %v879 = vsel %vm877, %v829, %v878
        %880 = vst [vmem:[#allocation2 + $0x4] sm:$0xf] %v879
        %v881 = vld [vmem:[#allocation2 + $0x10] sm:$0xf]
        %v882 = vsel %vm877, %v831, %v881
        %883 = vst [vmem:[#allocation2 + $0x10] sm:$0xf] %v882
        %v884 = vld [vmem:[#allocation2 + $0x1c] sm:$0xf]
        %v885 = vsel %vm877, %v833, %v884
        %886 = vst [vmem:[#allocation2 + $0x1c] sm:$0xf] %v885
        %v887 = vld [vmem:[#allocation2 + $0x28] sm:$0xf]
        %v888 = vsel %vm877, %v835, %v887
        %889 = vst [vmem:[#allocation2 + $0x28] sm:$0xf] %v888
        %v890 = vld [vmem:[#allocation2 + $0x34] sm:$0xf]
        %v891 = vsel %vm877, %v837, %v890
        %892 = vst [vmem:[#allocation2 + $0x34] sm:$0xf] %v891
        %v893 = vld [vmem:[#allocation2 + $0x40] sm:$0xf]
        %v894 = vsel %vm877, %v839, %v893
        %895 = vst [vmem:[#allocation2 + $0x40] sm:$0xf] %v894
        %v896 = vld [vmem:[#allocation2 + $0x4c] sm:$0xf]
        %v897 = vsel %vm877, %v841, %v896
        %898 = vst [vmem:[#allocation2 + $0x4c] sm:$0xf] %v897
        %v899 = vld [vmem:[#allocation2 + $0x58] sm:$0xf]
        %v900 = vsel %vm877, %v843, %v899
        %901 = vst [vmem:[#allocation2 + $0x58] sm:$0xf] %v900
        %v902 = vld [vmem:[#allocation2 + $0x64] sm:$0xf]
        %v903 = vsel %vm877, %v845, %v902
        %904 = vst [vmem:[#allocation2 + $0x64] sm:$0xf] %v903
        %v905 = vld [vmem:[#allocation2 + $0x70] sm:$0xf]
        %v906 = vsel %vm877, %v847, %v905
        %907 = vst [vmem:[#allocation2 + $0x70] sm:$0xf] %v906
        %v908 = vld [vmem:[#allocation2 + $0x7c] sm:$0xf]
        %v909 = vsel %vm877, %v849, %v908
        %910 = vst [vmem:[#allocation2 + $0x7c] sm:$0xf] %v909
        %v911 = vld [vmem:[#allocation2 + $0x88] sm:$0xf]
        %v912 = vsel %vm877, %v851, %v911
        %913 = vst [vmem:[#allocation2 + $0x88] sm:$0xf] %v912
        %v914 = vld [vmem:[#allocation2 + $0x94] sm:$0xf]
        %v915 = vsel %vm877, %v853, %v914
        %916 = vst [vmem:[#allocation2 + $0x94] sm:$0xf] %v915
        %v917 = vld [vmem:[#allocation2 + $0xa0] sm:$0xf]
        %v918 = vsel %vm877, %v855, %v917
        %919 = vst [vmem:[#allocation2 + $0xa0] sm:$0xf] %v918
        %v920 = vld [vmem:[#allocation2 + $0xac] sm:$0xf]
        %v921 = vsel %vm877, %v857, %v920
        %922 = vst [vmem:[#allocation2 + $0xac] sm:$0xf] %v921
        %v923 = vld [vmem:[#allocation2 + $0xb8] sm:$0xf]
        %v924 = vsel %vm877, %v859, %v923
        %925 = vst [vmem:[#allocation2 + $0xb8] sm:$0xf] %v924
        %926 = vrot.lane.b32.xlu0 %v341, 64
        %v927 = vpop.permute.xlu0 %926
        %928 = vrot.lane.b32.xlu0 %v348, 64
        %v929 = vpop.permute.xlu0 %928
        %930 = vrot.lane.b32.xlu0 %v355, 64
        %v931 = vpop.permute.xlu0 %930
        %932 = vrot.lane.b32.xlu0 %v362, 64
        %v933 = vpop.permute.xlu0 %932
        %934 = vrot.lane.b32.xlu0 %v369, 64
        %v935 = vpop.permute.xlu0 %934
        %936 = vrot.lane.b32.xlu0 %v376, 64
        %v937 = vpop.permute.xlu0 %936
        %938 = vrot.lane.b32.xlu0 %v698, 64
        %v939 = vpop.permute.xlu0 %938
        %940 = vrot.lane.b32.xlu0 %v390, 64
        %v941 = vpop.permute.xlu0 %940
        %942 = vrot.lane.b32.xlu0 %v397, 64
        %v943 = vpop.permute.xlu0 %942
        %944 = vrot.lane.b32.xlu0 %v404, 64
        %v945 = vpop.permute.xlu0 %944
        %946 = vrot.lane.b32.xlu0 %v411, 64
        %v947 = vpop.permute.xlu0 %946
        %948 = vrot.lane.b32.xlu0 %v418, 64
        %v949 = vpop.permute.xlu0 %948
        %950 = vrot.lane.b32.xlu0 %v425, 64
        %v951 = vpop.permute.xlu0 %950
        %952 = vrot.lane.b32.xlu0 %v705, 64
        %v953 = vpop.permute.xlu0 %952
        %vm968 = vmand %vm641, %vm442
        %v969 = vld [vmem:[#allocation2 + $0x4] sm:$0xf]
        %v970 = vsel %vm968, %v927, %v969
        %971 = vst [vmem:[#allocation2 + $0x4] sm:$0xf] %v970
        %v972 = vld [vmem:[#allocation2 + $0x10] sm:$0xf]
        %v973 = vsel %vm968, %v929, %v972
        %974 = vst [vmem:[#allocation2 + $0x10] sm:$0xf] %v973
        %v975 = vld [vmem:[#allocation2 + $0x1c] sm:$0xf]
        %v976 = vsel %vm968, %v931, %v975
        %977 = vst [vmem:[#allocation2 + $0x1c] sm:$0xf] %v976
        %v978 = vld [vmem:[#allocation2 + $0x28] sm:$0xf]
        %v979 = vsel %vm968, %v933, %v978
        %980 = vst [vmem:[#allocation2 + $0x28] sm:$0xf] %v979
        %v981 = vld [vmem:[#allocation2 + $0x34] sm:$0xf]
        %v982 = vsel %vm968, %v935, %v981
        %983 = vst [vmem:[#allocation2 + $0x34] sm:$0xf] %v982
        %v984 = vld [vmem:[#allocation2 + $0x40] sm:$0xf]
        %v985 = vsel %vm968, %v937, %v984
        %986 = vst [vmem:[#allocation2 + $0x40] sm:$0xf] %v985
        %v987 = vld [vmem:[#allocation2 + $0x4c] sm:$0xf]
        %v988 = vsel %vm968, %v939, %v987
        %989 = vst [vmem:[#allocation2 + $0x4c] sm:$0xf] %v988
        %v990 = vld [vmem:[#allocation2 + $0x64] sm:$0xf]
        %v991 = vsel %vm968, %v941, %v990
        %992 = vst [vmem:[#allocation2 + $0x64] sm:$0xf] %v991
        %v993 = vld [vmem:[#allocation2 + $0x70] sm:$0xf]
        %v994 = vsel %vm968, %v943, %v993
        %995 = vst [vmem:[#allocation2 + $0x70] sm:$0xf] %v994
        %v996 = vld [vmem:[#allocation2 + $0x7c] sm:$0xf]
        %v997 = vsel %vm968, %v945, %v996
        %998 = vst [vmem:[#allocation2 + $0x7c] sm:$0xf] %v997
        %v999 = vld [vmem:[#allocation2 + $0x88] sm:$0xf]
        %v1000 = vsel %vm968, %v947, %v999
        %1001 = vst [vmem:[#allocation2 + $0x88] sm:$0xf] %v1000
        %v1002 = vld [vmem:[#allocation2 + $0x94] sm:$0xf]
        %v1003 = vsel %vm968, %v949, %v1002
        %1004 = vst [vmem:[#allocation2 + $0x94] sm:$0xf] %v1003
        %v1005 = vld [vmem:[#allocation2 + $0xa0] sm:$0xf]
        %v1006 = vsel %vm968, %v951, %v1005
        %1007 = vst [vmem:[#allocation2 + $0xa0] sm:$0xf] %v1006
        %v1008 = vld [vmem:[#allocation2 + $0xac] sm:$0xf]
        %v1009 = vsel %vm968, %v953, %v1008
        %1010 = vst [vmem:[#allocation2 + $0xac] sm:$0xf] %v1009
        %1011 = vrot.lane.b32.xlu0 %v315, 96
        %v1012 = vpop.permute.xlu0 %1011
        %1013 = vrot.lane.b32.xlu0 %v316, 96
        %v1014 = vpop.permute.xlu0 %1013
        %1015 = vrot.lane.b32.xlu0 %v317, 96
        %v1016 = vpop.permute.xlu0 %1015
        %1017 = vrot.lane.b32.xlu0 %v318, 96
        %v1018 = vpop.permute.xlu0 %1017
        %1019 = vrot.lane.b32.xlu0 %v319, 96
        %v1020 = vpop.permute.xlu0 %1019
        %1021 = vrot.lane.b32.xlu0 %v320, 96
        %v1022 = vpop.permute.xlu0 %1021
        %1023 = vrot.lane.b32.xlu0 %v690, 96
        %v1024 = vpop.permute.xlu0 %1023
        %1025 = vrot.lane.b32.xlu0 %v322, 96
        %v1026 = vpop.permute.xlu0 %1025
        %1027 = vrot.lane.b32.xlu0 %v323, 96
        %v1028 = vpop.permute.xlu0 %1027
        %1029 = vrot.lane.b32.xlu0 %v324, 96
        %v1030 = vpop.permute.xlu0 %1029
        %1031 = vrot.lane.b32.xlu0 %v325, 96
        %v1032 = vpop.permute.xlu0 %1031
        %1033 = vrot.lane.b32.xlu0 %v326, 96
        %v1034 = vpop.permute.xlu0 %1033
        %1035 = vrot.lane.b32.xlu0 %v327, 96
        %v1036 = vpop.permute.xlu0 %1035
        %1037 = vrot.lane.b32.xlu0 %v691, 96
        %v1038 = vpop.permute.xlu0 %1037
        %vm1053 = vcmask 1044224
        %1054 = vst.msk [vmem:[#allocation2 + $0x4] sm:$0xf] %vm1053, %v1012
        %1055 = vst.msk [vmem:[#allocation2 + $0x10] sm:$0xf] %vm1053, %v1014
        %1056 = vst.msk [vmem:[#allocation2 + $0x1c] sm:$0xf] %vm1053, %v1016
        %1057 = vst.msk [vmem:[#allocation2 + $0x28] sm:$0xf] %vm1053, %v1018
        %1058 = vst.msk [vmem:[#allocation2 + $0x34] sm:$0xf] %vm1053, %v1020
        %1059 = vst.msk [vmem:[#allocation2 + $0x40] sm:$0xf] %vm1053, %v1022
        %1060 = vst.msk [vmem:[#allocation2 + $0x4c] sm:$0xf] %vm1053, %v1024
        %1061 = vst.msk [vmem:[#allocation2 + $0x64] sm:$0xf] %vm1053, %v1026
        %1062 = vst.msk [vmem:[#allocation2 + $0x70] sm:$0xf] %vm1053, %v1028
        %1063 = vst.msk [vmem:[#allocation2 + $0x7c] sm:$0xf] %vm1053, %v1030
        %1064 = vst.msk [vmem:[#allocation2 + $0x88] sm:$0xf] %vm1053, %v1032
        %1065 = vst.msk [vmem:[#allocation2 + $0x94] sm:$0xf] %vm1053, %v1034
        %1066 = vst.msk [vmem:[#allocation2 + $0xa0] sm:$0xf] %vm1053, %v1036
        %1067 = vst.msk [vmem:[#allocation2 + $0xac] sm:$0xf] %vm1053, %v1038
        %vm1082 = vmand %vm441, %vm642
        %v1083 = vld [vmem:[#allocation2 + $0x8] sm:$0xf]
        %v1084 = vsel %vm1082, %v550, %v1083
        %1085 = vst [vmem:[#allocation2 + $0x8] sm:$0xf] %v1084
        %v1086 = vld [vmem:[#allocation2 + $0x14] sm:$0xf]
        %v1087 = vsel %vm1082, %v554, %v1086
        %1088 = vst [vmem:[#allocation2 + $0x14] sm:$0xf] %v1087
        %v1089 = vld [vmem:[#allocation2 + $0x20] sm:$0xf]
        %v1090 = vsel %vm1082, %v558, %v1089
        %1091 = vst [vmem:[#allocation2 + $0x20] sm:$0xf] %v1090
        %v1092 = vld [vmem:[#allocation2 + $0x2c] sm:$0xf]
        %v1093 = vsel %vm1082, %v562, %v1092
        %1094 = vst [vmem:[#allocation2 + $0x2c] sm:$0xf] %v1093
        %v1095 = vld [vmem:[#allocation2 + $0x38] sm:$0xf]
        %v1096 = vsel %vm1082, %v566, %v1095
        %1097 = vst [vmem:[#allocation2 + $0x38] sm:$0xf] %v1096
        %v1098 = vld [vmem:[#allocation2 + $0x44] sm:$0xf]
        %v1099 = vsel %vm1082, %v570, %v1098
        %1100 = vst [vmem:[#allocation2 + $0x44] sm:$0xf] %v1099
        %v1101 = vld [vmem:[#allocation2 + $0x50] sm:$0xf]
        %v1102 = vsel %vm1082, %v823, %v1101
        %1103 = vst [vmem:[#allocation2 + $0x50] sm:$0xf] %v1102
        %v1104 = vld [vmem:[#allocation2 + $0x68] sm:$0xf]
        %v1105 = vsel %vm1082, %v578, %v1104
        %1106 = vst [vmem:[#allocation2 + $0x68] sm:$0xf] %v1105
        %v1107 = vld [vmem:[#allocation2 + $0x74] sm:$0xf]
        %v1108 = vsel %vm1082, %v582, %v1107
        %1109 = vst [vmem:[#allocation2 + $0x74] sm:$0xf] %v1108
        %v1110 = vld [vmem:[#allocation2 + $0x80] sm:$0xf]
        %v1111 = vsel %vm1082, %v586, %v1110
        %1112 = vst [vmem:[#allocation2 + $0x80] sm:$0xf] %v1111
        %v1113 = vld [vmem:[#allocation2 + $0x8c] sm:$0xf]
        %v1114 = vsel %vm1082, %v590, %v1113
        %1115 = vst [vmem:[#allocation2 + $0x8c] sm:$0xf] %v1114
        %v1116 = vld [vmem:[#allocation2 + $0x98] sm:$0xf]
        %v1117 = vsel %vm1082, %v594, %v1116
        %1118 = vst [vmem:[#allocation2 + $0x98] sm:$0xf] %v1117
        %v1119 = vld [vmem:[#allocation2 + $0xa4] sm:$0xf]
        %v1120 = vsel %vm1082, %v598, %v1119
        %1121 = vst [vmem:[#allocation2 + $0xa4] sm:$0xf] %v1120
        %v1122 = vld [vmem:[#allocation2 + $0xb0] sm:$0xf]
        %v1123 = vsel %vm1082, %v827, %v1122
        %1124 = vst [vmem:[#allocation2 + $0xb0] sm:$0xf] %v1123
        %v1125 = vld [vmem:[#allocation2] sm:$0xff]
        %v1126 = vld [vmem:[#allocation2 + $0x8] sm:$0xf]
        %v1127 = vld [vmem:[#allocation2 + $0xc] sm:$0xff]
        %v1128 = vld [vmem:[#allocation2 + $0x14] sm:$0xf]
        %v1129 = vld [vmem:[#allocation2 + $0x18] sm:$0xff]
        %v1130 = vld [vmem:[#allocation2 + $0x20] sm:$0xf]
        %v1131 = vld [vmem:[#allocation2 + $0x24] sm:$0xff]
        %v1132 = vld [vmem:[#allocation2 + $0x2c] sm:$0xf]
        %v1133 = vld [vmem:[#allocation2 + $0x30] sm:$0xff]
        %v1134 = vld [vmem:[#allocation2 + $0x38] sm:$0xf]
        %v1135 = vld [vmem:[#allocation2 + $0x3c] sm:$0xff]
        %v1136 = vld [vmem:[#allocation2 + $0x44] sm:$0xf]
        %v1137 = vld [vmem:[#allocation2 + $0x48] sm:$0xff]
        %v1138 = vld [vmem:[#allocation2 + $0x50] sm:$0xf]
        %v1139 = vld [vmem:[#allocation2 + $0x54] sm:$0xff]
        %v1140 = vld [vmem:[#allocation2 + $0x5c] sm:$0xf]
        %v1141 = vld [vmem:[#allocation2 + $0x60] sm:$0xff]
        %v1142 = vld [vmem:[#allocation2 + $0x68] sm:$0xf]
        %v1143 = vld [vmem:[#allocation2 + $0x6c] sm:$0xff]
        %v1144 = vld [vmem:[#allocation2 + $0x74] sm:$0xf]
        %v1145 = vld [vmem:[#allocation2 + $0x78] sm:$0xff]
        %v1146 = vld [vmem:[#allocation2 + $0x80] sm:$0xf]
        %v1147 = vld [vmem:[#allocation2 + $0x84] sm:$0xff]
        %v1148 = vld [vmem:[#allocation2 + $0x8c] sm:$0xf]
        %v1149 = vld [vmem:[#allocation2 + $0x90] sm:$0xff]
        %v1150 = vld [vmem:[#allocation2 + $0x98] sm:$0xf]
        %v1151 = vld [vmem:[#allocation2 + $0x9c] sm:$0xff]
        %v1152 = vld [vmem:[#allocation2 + $0xa4] sm:$0xf]
        %v1153 = vld [vmem:[#allocation2 + $0xa8] sm:$0xff]
        %v1154 = vld [vmem:[#allocation2 + $0xb0] sm:$0xf]
        %v1155 = vld [vmem:[#allocation2 + $0xb4] sm:$0xff]
        %v1156 = vld [vmem:[#allocation2 + $0xbc] sm:$0xf]
        %v1157 = vld [vmem:[%s1] sm:$0xf]
        %v1158 = vld [vmem:[%s1 + $0x4] sm:$0xf]
        %v1159 = vld [vmem:[%s1 + $0x8] sm:$0xf]
        %v1160 = vld [vmem:[%s1 + $0xc] sm:$0xf]
        %v1161 = vld [vmem:[%s1 + $0x10] sm:$0xf]
        %v1162 = vld [vmem:[%s1 + $0x14] sm:$0xf]
        %v1163 = vld [vmem:[%s1 + $0x18] sm:$0xf]
        %v1164 = vld [vmem:[%s1 + $0x1c] sm:$0xf]
        %v1165 = vld [vmem:[%s1 + $0x20] sm:$0xf]
        %v1166 = vld [vmem:[%s1 + $0x24] sm:$0xf]
        %v1167 = vld [vmem:[%s1 + $0x28] sm:$0xf]
        %v1168 = vld [vmem:[%s1 + $0x2c] sm:$0xf]
        %v1169 = vld [vmem:[%s1 + $0x30] sm:$0xf]
        %v1170 = vld [vmem:[%s1 + $0x34] sm:$0xf]
        %v1171 = vld [vmem:[%s1 + $0x38] sm:$0xf]
        %v1172 = vld [vmem:[%s1 + $0x3c] sm:$0xf]
        %v1173 = vld [vmem:[%s1 + $0x40] sm:$0xf]
        %v1174 = vld [vmem:[%s1 + $0x44] sm:$0xf]
        %v1175 = vld [vmem:[%s1 + $0x48] sm:$0xf]
        %v1176 = vld [vmem:[%s1 + $0x4c] sm:$0xf]
        %v1177 = vld [vmem:[%s1 + $0x50] sm:$0xf]
        %v1178 = vld [vmem:[%s1 + $0x54] sm:$0xf]
        %v1179 = vld [vmem:[%s1 + $0x58] sm:$0xf]
        %v1180 = vld [vmem:[%s1 + $0x5c] sm:$0xf]
        %v1181 = vld [vmem:[%s1 + $0x60] sm:$0xf]
        %v1182 = vld [vmem:[%s1 + $0x64] sm:$0xf]
        %v1183 = vld [vmem:[%s1 + $0x68] sm:$0xf]
        %v1184 = vld [vmem:[%s1 + $0x6c] sm:$0xf]
        %v1185 = vld [vmem:[%s1 + $0x70] sm:$0xf]
        %v1186 = vld [vmem:[%s1 + $0x74] sm:$0xf]
        %v1187 = vld [vmem:[%s1 + $0x78] sm:$0xf]
        %v1188 = vld [vmem:[%s1 + $0x7c] sm:$0xf]
        %v1189 = vld [vmem:[%s1 + $0x80] sm:$0xf]
        %v1190 = vld [vmem:[%s1 + $0x84] sm:$0xf]
        %v1191 = vld [vmem:[%s1 + $0x88] sm:$0xf]
        %v1192 = vld [vmem:[%s1 + $0x8c] sm:$0xf]
        %v1225 = vunpack.c.l.b16 %v1125
        %v1226 = vunpack.c.h.b16 %v1125
        %v1227 = vunpack.c.l.b16 %v1126
        %v1228 = vunpack.c.l.b16 %v1127
        %v1229 = vunpack.c.h.b16 %v1127
        %v1230 = vunpack.c.l.b16 %v1128
        %v1231 = vunpack.c.l.b16 %v1129
        %v1232 = vunpack.c.h.b16 %v1129
        %v1233 = vunpack.c.l.b16 %v1130
        %v1234 = vunpack.c.l.b16 %v1131
        %v1235 = vunpack.c.h.b16 %v1131
        %v1236 = vunpack.c.l.b16 %v1132
        %v1237 = vunpack.c.l.b16 %v1133
        %v1238 = vunpack.c.h.b16 %v1133
        %v1239 = vunpack.c.l.b16 %v1134
        %v1240 = vunpack.c.l.b16 %v1135
        %v1241 = vunpack.c.h.b16 %v1135
        %v1242 = vunpack.c.l.b16 %v1136
        %v1243 = vunpack.c.l.b16 %v1137
        %v1244 = vunpack.c.h.b16 %v1137
        %v1245 = vunpack.c.l.b16 %v1138
        %v1246 = vunpack.c.l.b16 %v1139
        %v1247 = vunpack.c.h.b16 %v1139
        %v1248 = vunpack.c.l.b16 %v1140
        %v1249 = vunpack.c.l.b16 %v1141
        %v1250 = vunpack.c.h.b16 %v1141
        %v1251 = vunpack.c.l.b16 %v1142
        %v1252 = vunpack.c.l.b16 %v1143
        %v1253 = vunpack.c.h.b16 %v1143
        %v1254 = vunpack.c.l.b16 %v1144
        %v1255 = vunpack.c.l.b16 %v1145
        %v1256 = vunpack.c.h.b16 %v1145
        %v1257 = vunpack.c.l.b16 %v1146
        %v1258 = vunpack.c.l.b16 %v1147
        %v1259 = vunpack.c.h.b16 %v1147
        %v1260 = vunpack.c.l.b16 %v1148
        %v1261 = vunpack.c.l.b16 %v1149
        %v1262 = vunpack.c.h.b16 %v1149
        %v1263 = vunpack.c.l.b16 %v1150
        %v1264 = vunpack.c.l.b16 %v1151
        %v1265 = vunpack.c.h.b16 %v1151
        %v1266 = vunpack.c.l.b16 %v1152
        %v1267 = vunpack.c.l.b16 %v1153
        %v1268 = vunpack.c.h.b16 %v1153
        %v1269 = vunpack.c.l.b16 %v1154
        %v1270 = vunpack.c.l.b16 %v1155
        %v1271 = vunpack.c.h.b16 %v1155
        %v1272 = vunpack.c.l.b16 %v1156
        %v1273 = vpack.c.b16 %v1228, %v1225
        %v1274 = vpack.c.b16 %v1229, %v1226
        %v1275 = vpack.c.b16 %v1230, %v1227
        %v1276 = vpack.c.b16 %v1234, %v1231
        %v1277 = vpack.c.b16 %v1235, %v1232
        %v1278 = vpack.c.b16 %v1236, %v1233
        %v1279 = vpack.c.b16 %v1240, %v1237
        %v1280 = vpack.c.b16 %v1241, %v1238
        %v1281 = vpack.c.b16 %v1242, %v1239
        %v1282 = vpack.c.b16 %v1246, %v1243
        %v1283 = vpack.c.b16 %v1247, %v1244
        %v1284 = vpack.c.b16 %v1248, %v1245
        %v1285 = vpack.c.b16 %v1252, %v1249
        %v1286 = vpack.c.b16 %v1253, %v1250
        %v1287 = vpack.c.b16 %v1254, %v1251
        %v1288 = vpack.c.b16 %v1258, %v1255
        %v1289 = vpack.c.b16 %v1259, %v1256
        %v1290 = vpack.c.b16 %v1260, %v1257
        %v1291 = vpack.c.b16 %v1264, %v1261
        %v1292 = vpack.c.b16 %v1265, %v1262
        %v1293 = vpack.c.b16 %v1266, %v1263
        %v1294 = vpack.c.b16 %v1270, %v1267
        %v1295 = vpack.c.b16 %v1271, %v1268
        %v1296 = vpack.c.b16 %v1272, %v1269
        %v1349 = vunpack.c.l.b16 %v1157
        %v1350 = vunpack.c.l.b16 %v1158
        %v1351 = vunpack.c.l.b16 %v1159
        %v1352 = vunpack.c.l.b16 %v1160
        %v1353 = vunpack.c.l.b16 %v1161
        %v1354 = vunpack.c.l.b16 %v1162
        %v1355 = vunpack.c.l.b16 %v1163
        %v1356 = vunpack.c.l.b16 %v1164
        %v1357 = vunpack.c.l.b16 %v1165
        %v1358 = vunpack.c.l.b16 %v1166
        %v1359 = vunpack.c.l.b16 %v1167
        %v1360 = vunpack.c.l.b16 %v1168
        %v1361 = vunpack.c.l.b16 %v1169
        %v1362 = vunpack.c.l.b16 %v1170
        %v1363 = vunpack.c.l.b16 %v1171
        %v1364 = vunpack.c.l.b16 %v1172
        %v1365 = vunpack.c.l.b16 %v1173
        %v1366 = vunpack.c.l.b16 %v1174
        %v1367 = vunpack.c.l.b16 %v1175
        %v1368 = vunpack.c.l.b16 %v1176
        %v1369 = vunpack.c.l.b16 %v1177
        %v1370 = vunpack.c.l.b16 %v1178
        %v1371 = vunpack.c.l.b16 %v1179
        %v1372 = vunpack.c.l.b16 %v1180
        %v1373 = vunpack.c.l.b16 %v1181
        %v1374 = vunpack.c.l.b16 %v1182
        %v1375 = vunpack.c.l.b16 %v1183
        %v1376 = vunpack.c.l.b16 %v1184
        %v1377 = vunpack.c.l.b16 %v1185
        %v1378 = vunpack.c.l.b16 %v1186
        %v1379 = vunpack.c.l.b16 %v1187
        %v1380 = vunpack.c.l.b16 %v1188
        %v1381 = vunpack.c.l.b16 %v1189
        %v1382 = vunpack.c.l.b16 %v1190
        %v1383 = vunpack.c.l.b16 %v1191
        %v1384 = vunpack.c.l.b16 %v1192
        %v1385 = vpack.c.b16 %v1350, %v1349
        %v1386 = vpack.c.b16 %v1352, %v1351
        %v1387 = vpack.c.b16 %v1354, %v1353
        %v1388 = vpack.c.b16 %v1356, %v1355
        %v1389 = vpack.c.b16 %v1358, %v1357
        %v1390 = vpack.c.b16 %v1360, %v1359
        %v1391 = vpack.c.b16 %v1362, %v1361
        %v1392 = vpack.c.b16 %v1364, %v1363
        %v1393 = vpack.c.b16 %v1366, %v1365
        %v1394 = vpack.c.b16 %v1368, %v1367
        %v1395 = vpack.c.b16 %v1370, %v1369
        %v1396 = vpack.c.b16 %v1372, %v1371
        %v1397 = vpack.c.b16 %v1374, %v1373
        %v1398 = vpack.c.b16 %v1376, %v1375
        %v1399 = vpack.c.b16 %v1378, %v1377
        %v1400 = vpack.c.b16 %v1380, %v1379
        %v1401 = vpack.c.b16 %v1382, %v1381
        %v1402 = vpack.c.b16 %v1384, %v1383
        %vm1421 = vcmask 261120
        %v1423 = vsel %vm1421, %v1275, 0
        %v1426 = vsel %vm1421, %v1278, 0
        %v1429 = vsel %vm1421, %v1281, 0
        %v1432 = vsel %vm1421, %v1284, 0
        %v1435 = vsel %vm1421, %v1287, 0
        %v1438 = vsel %vm1421, %v1290, 0
        %v1441 = vsel %vm1421, %v1293, 0
        %v1444 = vsel %vm1421, %v1296, 0
        %1446 = vmatprep.subr.bf16.mxu0 0
        %1447 = vmatpush1.bf16.msra.mxu0 %v1385
        %1448 = vmatprep.subr.bf16.mxu0 0
        %1449 = vmatpush1.bf16.msra.mxu0 %v1386
        %1450 = vmatprep.subr.bf16.mxu0 0
        %1451 = vmatpush1.bf16.msra.mxu0 %v1387
        %1452 = vmatprep.subr.bf16.mxu0 0
        %1453 = vmatpush1.bf16.msra.mxu0 %v1388
        %1454 = vmatprep.subr.bf16.mxu0 0
        %1455 = vmatpush1.bf16.msra.mxu0 %v1389
        %1456 = vmatprep.subr.bf16.mxu0 0
        %1457 = vmatpush1.bf16.msra.mxu0 %v1390
        %1458 = vmatprep.subr.bf16.mxu0 0
        %1459 = vmatpush1.bf16.msra.mxu0 %v1391
        %1460 = vmatprep.subr.bf16.mxu0 0
        %1461 = vmatpush1.bf16.msra.mxu0 %v1392
        %1462 = vmatprep.subr.bf16.mxu0 0
        %1463 = vmatpush1.bf16.msra.mxu0 %v1393
        %1464 = vmatprep.subr.bf16.mxu0 0
        %1465 = vmatpush1.bf16.msra.mxu0 %v1394
        %1466 = vmatprep.subr.bf16.mxu0 0
        %1467 = vmatpush1.bf16.msra.mxu0 %v1395
        %1468 = vmatprep.subr.bf16.mxu0 0
        %1469 = vmatpush1.bf16.msra.mxu0 %v1396
        %1470 = vmatprep.subr.bf16.mxu0 0
        %1471 = vmatpush1.bf16.msra.mxu0 %v1397
        %1472 = vmatprep.subr.bf16.mxu0 0
        %1473 = vmatpush1.bf16.msra.mxu0 %v1398
        %1474 = vmatprep.subr.bf16.mxu0 0
        %1475 = vmatpush1.bf16.msra.mxu0 %v1399
        %1476 = vmatprep.subr.bf16.mxu0 0
        %1477 = vmatpush1.bf16.msra.mxu0 %v1400
        %1478 = vmatprep.mubr.bf16.mxu0 %v1274
        %1479 = vmatmul.mubr.bf16.gmra.mrb[0].mxu0 %v1273
        %v1480 = vpop.f32.mrb[0].mxu0
        %v1481 = vadd.f32 0.0, %v1480
        %v1482 = vpop.f32.mrb[0].mxu0
        %v1483 = vpop.f32.mrb[0].mxu0
        %v1484 = vadd.f32 0.0, %v1483
        %v1485 = vpop.f32.mrb[0].mxu0
        %1486 = vmatprep.mubr.bf16.mxu0 %v1277
        %1487 = vmatmul.mubr.bf16.gmra.mrb[0].mxu0 %v1276
        %v1488 = vpop.f32.mrb[0].mxu0
        %v1489 = vadd.f32 0.0, %v1488
        %v1490 = vpop.f32.mrb[0].mxu0
        %v1491 = vpop.f32.mrb[0].mxu0
        %v1492 = vadd.f32 0.0, %v1491
        %v1493 = vpop.f32.mrb[0].mxu0
        %1494 = vmatprep.mubr.bf16.mxu0 %v1280
        %1495 = vmatmul.mubr.bf16.gmra.mrb[0].mxu0 %v1279
        %v1496 = vpop.f32.mrb[0].mxu0
        %v1497 = vadd.f32 0.0, %v1496
        %v1498 = vpop.f32.mrb[0].mxu0
        %v1499 = vpop.f32.mrb[0].mxu0
        %v1500 = vadd.f32 0.0, %v1499
        %v1501 = vpop.f32.mrb[0].mxu0
        %1502 = vmatprep.mubr.bf16.mxu0 %v1283
        %1503 = vmatmul.mubr.bf16.gmra.mrb[0].mxu0 %v1282
        %v1504 = vpop.f32.mrb[0].mxu0
        %v1505 = vadd.f32 0.0, %v1504
        %v1506 = vpop.f32.mrb[0].mxu0
        %v1507 = vpop.f32.mrb[0].mxu0
        %v1508 = vadd.f32 0.0, %v1507
        %v1509 = vpop.f32.mrb[0].mxu0
        %1510 = vmatprep.mubr.bf16.mxu0 %v1286
        %1511 = vmatmul.mubr.bf16.gmra.mrb[0].mxu0 %v1285
        %v1512 = vpop.f32.mrb[0].mxu0
        %v1513 = vadd.f32 0.0, %v1512
        %v1514 = vpop.f32.mrb[0].mxu0
        %v1515 = vpop.f32.mrb[0].mxu0
        %v1516 = vadd.f32 0.0, %v1515
        %v1517 = vpop.f32.mrb[0].mxu0
        %1518 = vmatprep.mubr.bf16.mxu0 %v1289
        %1519 = vmatmul.mubr.bf16.gmra.mrb[0].mxu0 %v1288
        %v1520 = vpop.f32.mrb[0].mxu0
        %v1521 = vadd.f32 0.0, %v1520
        %v1522 = vpop.f32.mrb[0].mxu0
        %v1523 = vpop.f32.mrb[0].mxu0
        %v1524 = vadd.f32 0.0, %v1523
        %v1525 = vpop.f32.mrb[0].mxu0
        %1526 = vmatprep.mubr.bf16.mxu0 %v1292
        %1527 = vmatmul.mubr.bf16.gmra.mrb[0].mxu0 %v1291
        %v1528 = vpop.f32.mrb[0].mxu0
        %v1529 = vadd.f32 0.0, %v1528
        %v1530 = vpop.f32.mrb[0].mxu0
        %v1531 = vpop.f32.mrb[0].mxu0
        %v1532 = vadd.f32 0.0, %v1531
        %v1533 = vpop.f32.mrb[0].mxu0
        %1534 = vmatprep.mubr.bf16.mxu0 %v1295
        %1535 = vmatmul.mubr.bf16.gmra.mrb[0].mxu0 %v1294
        %v1536 = vpop.f32.mrb[0].mxu0
        %v1537 = vadd.f32 0.0, %v1536
        %v1538 = vpop.f32.mrb[0].mxu0
        %v1539 = vpop.f32.mrb[0].mxu0
        %v1540 = vadd.f32 0.0, %v1539
        %v1541 = vpop.f32.mrb[0].mxu0
        %1542 = vdwg.mxu0
        %1543 = vmatprep.subr.bf16.mxu0 0
        %1544 = vmatpush1.bf16.msra.mxu0 %v1401
        %1545 = vmatprep.subr.bf16.mxu0 0
        %1546 = vmatpush1.bf16.msra.mxu0 %v1402
        %1547 = vmatprep.subr.bf16.mxu0 0
        %1548 = vmatpush1.bf16.msra.mxu0 0
        %1549 = vmatprep.subr.bf16.mxu0 0
        %1550 = vmatpush1.bf16.msra.mxu0 0
        %1551 = vmatprep.subr.bf16.mxu0 0
        %1552 = vmatpush1.bf16.msra.mxu0 0
        %1553 = vmatprep.subr.bf16.mxu0 0
        %1554 = vmatpush1.bf16.msra.mxu0 0
        %1555 = vmatprep.subr.bf16.mxu0 0
        %1556 = vmatpush1.bf16.msra.mxu0 0
        %1557 = vmatprep.subr.bf16.mxu0 0
        %1558 = vmatpush1.bf16.msra.mxu0 0
        %1559 = vmatprep.subr.bf16.mxu0 0
        %1560 = vmatpush1.bf16.msra.mxu0 0
        %1561 = vmatprep.subr.bf16.mxu0 0
        %1562 = vmatpush1.bf16.msra.mxu0 0
        %1563 = vmatprep.subr.bf16.mxu0 0
        %1564 = vmatpush1.bf16.msra.mxu0 0
        %1565 = vmatprep.subr.bf16.mxu0 0
        %1566 = vmatpush1.bf16.msra.mxu0 0
        %1567 = vmatprep.subr.bf16.mxu0 0
        %1568 = vmatpush1.bf16.msra.mxu0 0
        %1569 = vmatprep.subr.bf16.mxu0 0
        %1570 = vmatpush1.bf16.msra.mxu0 0
        %1571 = vmatprep.subr.bf16.mxu0 0
        %1572 = vmatpush1.bf16.msra.mxu0 0
        %1573 = vmatprep.subr.bf16.mxu0 0
        %1574 = vmatpush1.bf16.msra.mxu0 0
        %1575 = vmatprep.mubr.bf16.mxu0 0
        %1576 = vmatmul.mubr.bf16.gmra.mrb[0].mxu0 %v1423
        %v1577 = vpop.f32.mrb[0].mxu0
        %v1578 = vadd.f32 %v1481, %v1577
        %v1579 = vpop.f32.mrb[0].mxu0
        %v1580 = vpop.f32.mrb[0].mxu0
        %v1581 = vadd.f32 %v1484, %v1580
        %v1582 = vpop.f32.mrb[0].mxu0
        %1583 = vmatprep.mubr.bf16.mxu0 0
        %1584 = vmatmul.mubr.bf16.gmra.mrb[0].mxu0 %v1426
        %v1585 = vpop.f32.mrb[0].mxu0
        %v1586 = vadd.f32 %v1489, %v1585
        %v1587 = vpop.f32.mrb[0].mxu0
        %v1588 = vpop.f32.mrb[0].mxu0
        %v1589 = vadd.f32 %v1492, %v1588
        %v1590 = vpop.f32.mrb[0].mxu0
        %1591 = vmatprep.mubr.bf16.mxu0 0
        %1592 = vmatmul.mubr.bf16.gmra.mrb[0].mxu0 %v1429
        %v1593 = vpop.f32.mrb[0].mxu0
        %v1594 = vadd.f32 %v1497, %v1593
        %v1595 = vpop.f32.mrb[0].mxu0
        %v1596 = vpop.f32.mrb[0].mxu0
        %v1597 = vadd.f32 %v1500, %v1596
        %v1598 = vpop.f32.mrb[0].mxu0
        %1599 = vmatprep.mubr.bf16.mxu0 0
        %1600 = vmatmul.mubr.bf16.gmra.mrb[0].mxu0 %v1432
        %v1601 = vpop.f32.mrb[0].mxu0
        %v1602 = vadd.f32 %v1505, %v1601
        %v1603 = vpop.f32.mrb[0].mxu0
        %v1604 = vpop.f32.mrb[0].mxu0
        %v1605 = vadd.f32 %v1508, %v1604
        %v1606 = vpop.f32.mrb[0].mxu0
        %1607 = vmatprep.mubr.bf16.mxu0 0
        %1608 = vmatmul.mubr.bf16.gmra.mrb[0].mxu0 %v1435
        %v1609 = vpop.f32.mrb[0].mxu0
        %v1610 = vadd.f32 %v1513, %v1609
        %v1611 = vpop.f32.mrb[0].mxu0
        %v1612 = vpop.f32.mrb[0].mxu0
        %v1613 = vadd.f32 %v1516, %v1612
        %v1614 = vpop.f32.mrb[0].mxu0
        %1615 = vmatprep.mubr.bf16.mxu0 0
        %1616 = vmatmul.mubr.bf16.gmra.mrb[0].mxu0 %v1438
        %v1617 = vpop.f32.mrb[0].mxu0
        %v1618 = vadd.f32 %v1521, %v1617
        %v1619 = vpop.f32.mrb[0].mxu0
        %v1620 = vpop.f32.mrb[0].mxu0
        %v1621 = vadd.f32 %v1524, %v1620
        %v1622 = vpop.f32.mrb[0].mxu0
        %1623 = vmatprep.mubr.bf16.mxu0 0
        %1624 = vmatmul.mubr.bf16.gmra.mrb[0].mxu0 %v1441
        %v1625 = vpop.f32.mrb[0].mxu0
        %v1626 = vadd.f32 %v1529, %v1625
        %v1627 = vpop.f32.mrb[0].mxu0
        %v1628 = vpop.f32.mrb[0].mxu0
        %v1629 = vadd.f32 %v1532, %v1628
        %v1630 = vpop.f32.mrb[0].mxu0
        %1631 = vmatprep.mubr.bf16.mxu0 0
        %1632 = vmatmul.mubr.bf16.gmra.mrb[0].mxu0 %v1444
        %v1633 = vpop.f32.mrb[0].mxu0
        %v1634 = vadd.f32 %v1537, %v1633
        %v1635 = vpop.f32.mrb[0].mxu0
        %v1636 = vpop.f32.mrb[0].mxu0
        %v1637 = vadd.f32 %v1540, %v1636
        %v1638 = vpop.f32.mrb[0].mxu0
        %1639 = vdwg.mxu0
        %v1640 = vld [vmem:[%s2] sm:$0x1]
        %v1642 = vlaneseq
        %v1643 = vshrl.u32 %v1642, 7
        %v1644 = vsub.s32 0, %v1643
        %v1645 = vrot.slane %v1640, %v1644
        %v1647 = vmul.f32 %v1578, %v1645
        %v1648 = vmul.f32 %v1581, %v1645
        %v1649 = vmul.f32 %v1586, %v1645
        %v1650 = vmul.f32 %v1589, %v1645
        %v1651 = vmul.f32 %v1594, %v1645
        %v1652 = vmul.f32 %v1597, %v1645
        %v1653 = vmul.f32 %v1602, %v1645
        %v1654 = vmul.f32 %v1605, %v1645
        %v1655 = vmul.f32 %v1610, %v1645
        %v1656 = vmul.f32 %v1613, %v1645
        %v1657 = vmul.f32 %v1618, %v1645
        %v1658 = vmul.f32 %v1621, %v1645
        %v1659 = vmul.f32 %v1626, %v1645
        %v1660 = vmul.f32 %v1629, %v1645
        %v1661 = vmul.f32 %v1634, %v1645
        %v1662 = vmul.f32 %v1637, %v1645
        %v1663 = vld [vmem:[%s3] sm:$0x1]
        %v1665 = vlaneseq
        %v1666 = vshrl.u32 %v1665, 7
        %v1667 = vsub.s32 0, %v1666
        %v1668 = vrot.slane %v1663, %v1667
        %v1670 = vadd.f32 %v1647, %v1668
        %v1671 = vadd.f32 %v1648, %v1668
        %v1672 = vadd.f32 %v1649, %v1668
        %v1673 = vadd.f32 %v1650, %v1668
        %v1674 = vadd.f32 %v1651, %v1668
        %v1675 = vadd.f32 %v1652, %v1668
        %v1676 = vadd.f32 %v1653, %v1668
        %v1677 = vadd.f32 %v1654, %v1668
        %v1678 = vadd.f32 %v1655, %v1668
        %v1679 = vadd.f32 %v1656, %v1668
        %v1680 = vadd.f32 %v1657, %v1668
        %v1681 = vadd.f32 %v1658, %v1668
        %v1682 = vadd.f32 %v1659, %v1668
        %v1683 = vadd.f32 %v1660, %v1668
        %v1684 = vadd.f32 %v1661, %v1668
        %v1685 = vadd.f32 %v1662, %v1668
        %v1686 = vadd.f32 %v221, %v1670
        %v1687 = vadd.f32 %v222, %v1671
        %v1688 = vadd.f32 %v223, %v1672
        %v1689 = vadd.f32 %v224, %v1673
        %v1690 = vadd.f32 %v225, %v1674
        %v1691 = vadd.f32 %v226, %v1675
        %v1692 = vadd.f32 %v227, %v1676
        %v1693 = vadd.f32 %v228, %v1677
        %v1694 = vadd.f32 %v229, %v1678
        %v1695 = vadd.f32 %v230, %v1679
        %v1696 = vadd.f32 %v231, %v1680
        %v1697 = vadd.f32 %v232, %v1681
        %v1698 = vadd.f32 %v233, %v1682
        %v1699 = vadd.f32 %v234, %v1683
        %v1700 = vadd.f32 %v235, %v1684
        %v1701 = vadd.f32 %v236, %v1685
        %v1702 = vmax.f32 %v1686, 0.0
        %v1703 = vmax.f32 %v1687, 0.0
        %v1704 = vmax.f32 %v1688, 0.0
        %v1705 = vmax.f32 %v1689, 0.0
        %v1706 = vmax.f32 %v1690, 0.0
        %v1707 = vmax.f32 %v1691, 0.0
        %v1708 = vmax.f32 %v1692, 0.0
        %v1709 = vmax.f32 %v1693, 0.0
        %v1710 = vmax.f32 %v1694, 0.0
        %v1711 = vmax.f32 %v1695, 0.0
        %v1712 = vmax.f32 %v1696, 0.0
        %v1713 = vmax.f32 %v1697, 0.0
        %v1714 = vmax.f32 %v1698, 0.0
        %v1715 = vmax.f32 %v1699, 0.0
        %v1716 = vmax.f32 %v1700, 0.0
        %v1717 = vmax.f32 %v1701, 0.0
        %1718 = vst.msk [vmem:[%s219] sm:$0xff] %vm1421, %v1702
        %1719 = vst.msk [vmem:[%s219 + $0x8] sm:$0xff] %vm1421, %v1703
        %1720 = vst.msk [vmem:[%s219 + $0x10] sm:$0xff] %vm1421, %v1704
        %1721 = vst.msk [vmem:[%s219 + $0x18] sm:$0xff] %vm1421, %v1705
        %1722 = vst.msk [vmem:[%s219 + $0x20] sm:$0xff] %vm1421, %v1706
        %1723 = vst.msk [vmem:[%s219 + $0x28] sm:$0xff] %vm1421, %v1707
        %1724 = vst.msk [vmem:[%s219 + $0x30] sm:$0xff] %vm1421, %v1708
        %1725 = vst.msk [vmem:[%s219 + $0x38] sm:$0xff] %vm1421, %v1709
        %1726 = vst.msk [vmem:[%s219 + $0x40] sm:$0xff] %vm1421, %v1710
        %1727 = vst.msk [vmem:[%s219 + $0x48] sm:$0xff] %vm1421, %v1711
        %1728 = vst.msk [vmem:[%s219 + $0x50] sm:$0xff] %vm1421, %v1712
        %1729 = vst.msk [vmem:[%s219 + $0x58] sm:$0xff] %vm1421, %v1713
        %1730 = vst.msk [vmem:[%s219 + $0x60] sm:$0xff] %vm1421, %v1714
        %1731 = vst.msk [vmem:[%s219 + $0x68] sm:$0xff] %vm1421, %v1715
        %1732 = vst.msk [vmem:[%s219 + $0x70] sm:$0xff] %vm1421, %v1716
        %1733 = vst.msk [vmem:[%s219 + $0x78] sm:$0xff] %vm1421, %v1717
        %p1734 = scmp.lt.s32.totalorder %s18, 1
        %s1735 = scalar_select %p1734, %s18, 1
        %s1736 = smul.addr %s1735, 16
        %s1737 = smul.addr %s1736, 8
        %s1738 = scalar_lea.vmem %s4, %s1737
        // Predicated region
        $region41: #{tpu_custom_call.1} parent=35 // pred_check
          %p1739 = pneg %p125
        $region42: #{tpu_custom_call.1} parent=35 // pred_check_branch
          %1741 = sbr.rel (%p1739) target = $region44
        $region43: #{tpu_custom_call.1} parent=35 // pred_region
          _
        $region44: #{tpu_custom_call.1} parent=35 // pred_fallthru
          _
      $region36: #{tpu_custom_call.1} parent=5 // pred_fallthru
        _
      %p1742 = scmp.le.s32.totalorder 2, %s13
      // Predicated region
      $region45: #{tpu_custom_call.1} parent=5 // pred_check
        %p1743 = pneg %p1742
      $region46: #{tpu_custom_call.1} parent=5 // pred_check_branch
        %1745 = sbr.rel (%p1743) target = $region48
      $region47: #{tpu_custom_call.1} parent=5 // pred_region
        %s1746 = ssub.s32 %s13, 2
        // Predicated region
        $region49: #{tpu_custom_call.1} parent=47 // pred_check
          %p1747 = pneg %p131
        $region50: #{tpu_custom_call.1} parent=47 // pred_check_branch
          %1749 = sbr.rel (%p1747) target = $region52
        $region51: #{tpu_custom_call.1} parent=47 // pred_region
          %p1750 = scmp.lt.s32.totalorder %s19, 1
          %s1751 = scalar_select %p1750, %s19, 1
          %s1752 = smul.addr %s1751, 16
          %s1753 = smul.addr %s1752, 8
          %s1754 = scalar_lea.vmem %s4, %s1753
        $region52: #{tpu_custom_call.1} parent=47 // pred_fallthru
          _
      $region48: #{tpu_custom_call.1} parent=5 // pred_fallthru
        _
    $region6: #{tpu_custom_call.1} parent=1 // loop_footer
      %s17 = sadd.s32 1, %s13
    $region7: #{tpu_custom_call.1} parent=1 // loop_footer_branch
      %12 = sbr.rel target = $region3
    $region8: #{tpu_custom_call.1} parent=1 // loop_exit
      _
    %1755 = vsyncpa [#allocation4], 1
    %s1756 = scalar_lea.sflag [#allocation4], 1
    %1757 = vsyncpa %s1756, 1

</llo_original>
